<compile_context>
chip_gen: v5e
topology: v5e:2x2
jax: 0.10.0
libtpu: 0.0.40
codegen_flags: <defaults>
</compile_context>

<pallas_src>
import functools

import jax
import jax.numpy as jnp
from jax.experimental import pallas as pl
from jax.experimental.pallas import tpu as pltpu

IN_DIM = 28 * 28
DIMS = [IN_DIM, 128, 64, 12, 3, 12, 64, 128, IN_DIM]          # 8 original linears
FUSED_DIMS = [IN_DIM, 128, 64, 12, 12, 64, 128, IN_DIM]       # 7 after 12->3->12 fusion


def _cdiv(a, b):
    return (a + b - 1) // b


def _round_up(n, m):
    return _cdiv(n, m) * m


def fuse_params(params):
    """Fuse the activation-free pair Linear(12,3) -> Linear(3,12) into one 12->12 linear.

    Exact in real arithmetic: (h@W4 + b4)@W5 + b5 == h@(W4@W5) + (b4@W5 + b5).
    Done in f32; the fused weight is bf16-cast later like every other weight.
    """
    assert len(params) == 8
    (w4, b4), (w5, b5) = params[3], params[4]
    wf = jnp.dot(w4, w5)                 # (12,3)@(3,12) -> (12,12)
    bf = jnp.dot(b4, w5) + b5            # (1,3)@(3,12)+(1,12) -> (1,12)
    return list(params[:3]) + [(wf, bf)] + list(params[5:])


def _ae_kernel(x_ref,
               w1, b1, w2, b2, w3, b3, wf, bf,
               w5, b5, w6, b6, w7, b7,
               o_ref):
    """Full autoencoder forward for one (tb_eff, 784) batch tile; everything in VMEM.

    Weights arrive pre-cast to bf16; matmuls run bf16 x bf16 -> f32 on the MXU.
    Bias add + ReLU happen in f32, activations are carried in bf16 between layers,
    final tanh in f32.
    """
    h = x_ref[...].astype(jnp.bfloat16)

    def lin(h, w_ref, b_ref):
        return (jnp.dot(h, w_ref[...], preferred_element_type=jnp.float32)
                + b_ref[...])

    def lin_relu(h, w_ref, b_ref):
        return jnp.maximum(lin(h, w_ref, b_ref), 0.0).astype(jnp.bfloat16)

    # ---- encoder ----
    h = lin_relu(h, w1, b1)          # 784 -> 128
    h = lin_relu(h, w2, b2)          # 128 -> 64
    h = lin_relu(h, w3, b3)          # 64  -> 12
    # ---- fused latent (12 -> 3 -> 12, no activation in between) + decoder ----
    h = lin_relu(h, wf, bf)          # 12  -> 12 (fused), then ReLU (decoder's first)
    h = lin_relu(h, w5, b5)          # 12  -> 64
    h = lin_relu(h, w6, b6)          # 64  -> 128
    h = jnp.tanh(lin(h, w7, b7))     # 128 -> 784, tanh in f32

    o_ref[...] = h.astype(o_ref.dtype)


@functools.partial(jax.jit, static_argnames=("tb",))
def autoencoder_forward(x, params, *, tb=1024):
    """x: (B, 784) float32. params: list of 8 (W(in,out) f32, b(1,out) f32) pairs."""
    B, D = x.shape
    assert D == IN_DIM
    assert tb % 8 == 0 and tb > 0

    fused = fuse_params(params)

    # Cast matmul weights to bf16 once (MXU-native operands); keep biases f32.
    flat_params = []
    param_specs = []
    for (w, b) in fused:
        flat_params.append(w.astype(jnp.bfloat16))
        flat_params.append(b.astype(jnp.float32))
        # Constant index_map -> block never changes -> params stay resident in VMEM.
        param_specs.append(pl.BlockSpec(w.shape, lambda i: (0, 0)))
        param_specs.append(pl.BlockSpec(b.shape, lambda i: (0, 0)))

    # Balanced batch tile:
    #   * >= 2 grid steps whenever possible so v7x's 2 TCs both get work,
    #   * tile sized to cdiv(B, n_steps) (rounded to 8) so padding waste stays small.
    min_steps = 2 if B >= 16 else 1
    n_steps = max(_cdiv(B, tb), min_steps)
    tb_eff = _round_up(_cdiv(B, n_steps), 8)
    Bp = n_steps * tb_eff
    xp = x if Bp == B else jnp.pad(x, ((0, Bp - B), (0, 0)))

    x_spec = pl.BlockSpec((tb_eff, IN_DIM), lambda i: (i, 0))
    out_spec = pl.BlockSpec((tb_eff, IN_DIM), lambda i: (i, 0))

    flops = 2 * Bp * sum(FUSED_DIMS[i] * FUSED_DIMS[i + 1]
                         for i in range(len(FUSED_DIMS) - 1))
    param_bytes = sum(p.size * p.dtype.itemsize for p in flat_params)
    bytes_accessed = 2 * Bp * IN_DIM * xp.dtype.itemsize + param_bytes

    out = pl.pallas_call(
        _ae_kernel,
        out_shape=jax.ShapeDtypeStruct((Bp, IN_DIM), x.dtype),
        grid_spec=pltpu.PrefetchScalarGridSpec(
            num_scalar_prefetch=0,
            grid=(n_steps,),
            in_specs=[x_spec] + param_specs,
            out_specs=out_spec,
        ),
        compiler_params=pltpu.CompilerParams(
            dimension_semantics=("parallel",),        # shards over v7x's 2 TCs
            vmem_limit_bytes=48 * 1024 * 1024,        # tb=1024 fits; <=48 MiB for v7x
        ),
        cost_estimate=pl.CostEstimate(
            flops=flops,
            transcendentals=Bp * IN_DIM,              # final tanh
            bytes_accessed=bytes_accessed,
        ),
    )(xp, *flat_params)

    return out if Bp == B else out[:B]


def init_params(key):
    """Deterministic PyTorch-style Linear init: U(-1/sqrt(fan_in), +1/sqrt(fan_in))."""
    params = []
    for li in range(len(DIMS) - 1):
        fan_in, fan_out = DIMS[li], DIMS[li + 1]
        key, kw, kb = jax.random.split(key, 3)
        bound = 1.0 / jnp.sqrt(fan_in)
        w = jax.random.uniform(kw, (fan_in, fan_out), jnp.float32, -bound, bound)
        b = jax.random.uniform(kb, (1, fan_out), jnp.float32, -bound, bound)
        params.append((w, b))
    return params


def reference_forward(x, params):
    """Pure-JAX reference mirroring the kernel numerics exactly
    (fused 12->3->12 layer, bf16 operands, f32 accumulation, bf16 activations)."""
    fused = fuse_params(params)
    h = x.astype(jnp.bfloat16)
    for li, (w, b) in enumerate(fused):
        z = jnp.dot(h, w.astype(jnp.bfloat16),
                    preferred_element_type=jnp.float32) + b
        if li < len(fused) - 1:
            h = jnp.maximum(z, 0.0).astype(jnp.bfloat16)
        else:
            h = jnp.tanh(z)
    return h


if __name__ == "__main__":
    key = jax.random.PRNGKey(0)
    key, kx = jax.random.split(key)

    # Small, uneven batch: exercises padding, the balanced tile and the >=2-step grid.
    B = 37
    x = jax.random.normal(kx, (B, IN_DIM), jnp.float32)
    params = init_params(key)

    out = jax.block_until_ready(autoencoder_forward(x, params))

    ref = reference_forward(x, params)
    assert out.shape == (B, IN_DIM)
    max_err = jnp.max(jnp.abs(out - ref))
    # bf16 matmul operands (K up to 784) -> small deviation vs an f32 torch model.
    assert jnp.allclose(out, ref, atol=2e-3, rtol=2e-3), (
        f"mismatch vs JAX reference (max |err| = {max_err})")

    print("KERNEL_OK")
</pallas_src>

<mosaic_0001>
module attributes {stable_mosaic.version = 11 : i64} {
  func.func @_ae_kernel(%arg0: i32, %arg1: memref<24x784xf32, #tpu.memory_space<vmem>>, %arg2: memref<784x128xbf16, #tpu.memory_space<vmem>>, %arg3: memref<1x128xf32, #tpu.memory_space<vmem>>, %arg4: memref<128x64xbf16, #tpu.memory_space<vmem>>, %arg5: memref<1x64xf32, #tpu.memory_space<vmem>>, %arg6: memref<64x12xbf16, #tpu.memory_space<vmem>>, %arg7: memref<1x12xf32, #tpu.memory_space<vmem>>, %arg8: memref<12x12xbf16, #tpu.memory_space<vmem>>, %arg9: memref<1x12xf32, #tpu.memory_space<vmem>>, %arg10: memref<12x64xbf16, #tpu.memory_space<vmem>>, %arg11: memref<1x64xf32, #tpu.memory_space<vmem>>, %arg12: memref<64x128xbf16, #tpu.memory_space<vmem>>, %arg13: memref<1x128xf32, #tpu.memory_space<vmem>>, %arg14: memref<128x784xbf16, #tpu.memory_space<vmem>>, %arg15: memref<1x784xf32, #tpu.memory_space<vmem>>, %arg16: memref<24x784xf32, #tpu.memory_space<vmem>>) attributes {dimension_semantics = [#tpu.dimension_semantics<parallel>], iteration_bounds = array<i64: 2>, scalar_prefetch = 0 : i64, scratch_operands = 0 : i64, tpu.core_type = #tpu.core_type<tc>, window_params = [{transform_indices = @transform_0, window_bounds = array<i64: 24, 784>}, {pipeline_mode = #tpu.pipeline_mode<synchronous>, transform_indices = @transform_1, window_bounds = array<i64: 784, 128>}, {pipeline_mode = #tpu.pipeline_mode<synchronous>, transform_indices = @transform_2, window_bounds = array<i64: 1, 128>}, {pipeline_mode = #tpu.pipeline_mode<synchronous>, transform_indices = @transform_3, window_bounds = array<i64: 128, 64>}, {pipeline_mode = #tpu.pipeline_mode<synchronous>, transform_indices = @transform_4, window_bounds = array<i64: 1, 64>}, {pipeline_mode = #tpu.pipeline_mode<synchronous>, transform_indices = @transform_5, window_bounds = array<i64: 64, 12>}, {pipeline_mode = #tpu.pipeline_mode<synchronous>, transform_indices = @transform_6, window_bounds = array<i64: 1, 12>}, {pipeline_mode = #tpu.pipeline_mode<synchronous>, transform_indices = @transform_7, window_bounds = array<i64: 12, 12>}, {pipeline_mode = #tpu.pipeline_mode<synchronous>, transform_indices = @transform_8, window_bounds = array<i64: 1, 12>}, {pipeline_mode = #tpu.pipeline_mode<synchronous>, transform_indices = @transform_9, window_bounds = array<i64: 12, 64>}, {pipeline_mode = #tpu.pipeline_mode<synchronous>, transform_indices = @transform_10, window_bounds = array<i64: 1, 64>}, {pipeline_mode = #tpu.pipeline_mode<synchronous>, transform_indices = @transform_11, window_bounds = array<i64: 64, 128>}, {pipeline_mode = #tpu.pipeline_mode<synchronous>, transform_indices = @transform_12, window_bounds = array<i64: 1, 128>}, {pipeline_mode = #tpu.pipeline_mode<synchronous>, transform_indices = @transform_13, window_bounds = array<i64: 128, 784>}, {pipeline_mode = #tpu.pipeline_mode<synchronous>, transform_indices = @transform_14, window_bounds = array<i64: 1, 784>}, {transform_indices = @transform_15, window_bounds = array<i64: 24, 784>}]} {
    %c0 = arith.constant 0 : index
    %c0_0 = arith.constant 0 : index
    %0 = vector.load %arg1[%c0, %c0_0] : memref<24x784xf32, #tpu.memory_space<vmem>>, vector<24x784xf32>
    %1 = arith.truncf %0 : vector<24x784xf32> to vector<24x784xbf16>
    %c0_1 = arith.constant 0 : index
    %c0_2 = arith.constant 0 : index
    %2 = vector.load %arg2[%c0_1, %c0_2] : memref<784x128xbf16, #tpu.memory_space<vmem>>, vector<784x128xbf16>
    %cst = arith.constant dense<0.000000e+00> : vector<24x128xf32>
    %3 = tpu.matmul %1, %2, %cst {dimension_numbers = #tpu.dot_dimension_numbers<[1], [0], [0], [1], [0, 0, 1, 1], [], []>} : vector<24x784xbf16>, vector<784x128xbf16>, vector<24x128xf32> -> vector<24x128xf32>
    %c0_3 = arith.constant 0 : index
    %c0_4 = arith.constant 0 : index
    %4 = vector.load %arg3[%c0_3, %c0_4] : memref<1x128xf32, #tpu.memory_space<vmem>>, vector<1x128xf32>
    %5 = vector.broadcast %4 : vector<1x128xf32> to vector<24x128xf32>
    %6 = arith.addf %3, %5 : vector<24x128xf32>
    %cst_5 = arith.constant 0.000000e+00 : f32
    %7 = vector.broadcast %cst_5 : f32 to vector<24x128xf32>
    %8 = arith.maximumf %6, %7 : vector<24x128xf32>
    %9 = arith.truncf %8 : vector<24x128xf32> to vector<24x128xbf16>
    %c0_6 = arith.constant 0 : index
    %c0_7 = arith.constant 0 : index
    %10 = vector.load %arg4[%c0_6, %c0_7] : memref<128x64xbf16, #tpu.memory_space<vmem>>, vector<128x64xbf16>
    %cst_8 = arith.constant dense<0.000000e+00> : vector<24x64xf32>
    %11 = tpu.matmul %9, %10, %cst_8 {dimension_numbers = #tpu.dot_dimension_numbers<[1], [0], [0], [1], [0, 0, 1, 1], [], []>} : vector<24x128xbf16>, vector<128x64xbf16>, vector<24x64xf32> -> vector<24x64xf32>
    %c0_9 = arith.constant 0 : index
    %c0_10 = arith.constant 0 : index
    %12 = vector.load %arg5[%c0_9, %c0_10] : memref<1x64xf32, #tpu.memory_space<vmem>>, vector<1x64xf32>
    %13 = vector.broadcast %12 : vector<1x64xf32> to vector<24x64xf32>
    %14 = arith.addf %11, %13 : vector<24x64xf32>
    %cst_11 = arith.constant 0.000000e+00 : f32
    %15 = vector.broadcast %cst_11 : f32 to vector<24x64xf32>
    %16 = arith.maximumf %14, %15 : vector<24x64xf32>
    %17 = arith.truncf %16 : vector<24x64xf32> to vector<24x64xbf16>
    %c0_12 = arith.constant 0 : index
    %c0_13 = arith.constant 0 : index
    %18 = vector.load %arg6[%c0_12, %c0_13] : memref<64x12xbf16, #tpu.memory_space<vmem>>, vector<64x12xbf16>
    %cst_14 = arith.constant dense<0.000000e+00> : vector<24x12xf32>
    %19 = tpu.matmul %17, %18, %cst_14 {dimension_numbers = #tpu.dot_dimension_numbers<[1], [0], [0], [1], [0, 0, 1, 1], [], []>} : vector<24x64xbf16>, vector<64x12xbf16>, vector<24x12xf32> -> vector<24x12xf32>
    %c0_15 = arith.constant 0 : index
    %c0_16 = arith.constant 0 : index
    %20 = vector.load %arg7[%c0_15, %c0_16] : memref<1x12xf32, #tpu.memory_space<vmem>>, vector<1x12xf32>
    %21 = vector.broadcast %20 : vector<1x12xf32> to vector<24x12xf32>
    %22 = arith.addf %19, %21 : vector<24x12xf32>
    %cst_17 = arith.constant 0.000000e+00 : f32
    %23 = vector.broadcast %cst_17 : f32 to vector<24x12xf32>
    %24 = arith.maximumf %22, %23 : vector<24x12xf32>
    %25 = arith.truncf %24 : vector<24x12xf32> to vector<24x12xbf16>
    %c0_18 = arith.constant 0 : index
    %c0_19 = arith.constant 0 : index
    %26 = vector.load %arg8[%c0_18, %c0_19] : memref<12x12xbf16, #tpu.memory_space<vmem>>, vector<12x12xbf16>
    %cst_20 = arith.constant dense<0.000000e+00> : vector<24x12xf32>
    %27 = tpu.matmul %25, %26, %cst_20 {dimension_numbers = #tpu.dot_dimension_numbers<[1], [0], [0], [1], [0, 0, 1, 1], [], []>} : vector<24x12xbf16>, vector<12x12xbf16>, vector<24x12xf32> -> vector<24x12xf32>
    %c0_21 = arith.constant 0 : index
    %c0_22 = arith.constant 0 : index
    %28 = vector.load %arg9[%c0_21, %c0_22] : memref<1x12xf32, #tpu.memory_space<vmem>>, vector<1x12xf32>
    %29 = vector.broadcast %28 : vector<1x12xf32> to vector<24x12xf32>
    %30 = arith.addf %27, %29 : vector<24x12xf32>
    %cst_23 = arith.constant 0.000000e+00 : f32
    %31 = vector.broadcast %cst_23 : f32 to vector<24x12xf32>
    %32 = arith.maximumf %30, %31 : vector<24x12xf32>
    %33 = arith.truncf %32 : vector<24x12xf32> to vector<24x12xbf16>
    %c0_24 = arith.constant 0 : index
    %c0_25 = arith.constant 0 : index
    %34 = vector.load %arg10[%c0_24, %c0_25] : memref<12x64xbf16, #tpu.memory_space<vmem>>, vector<12x64xbf16>
    %cst_26 = arith.constant dense<0.000000e+00> : vector<24x64xf32>
    %35 = tpu.matmul %33, %34, %cst_26 {dimension_numbers = #tpu.dot_dimension_numbers<[1], [0], [0], [1], [0, 0, 1, 1], [], []>} : vector<24x12xbf16>, vector<12x64xbf16>, vector<24x64xf32> -> vector<24x64xf32>
    %c0_27 = arith.constant 0 : index
    %c0_28 = arith.constant 0 : index
    %36 = vector.load %arg11[%c0_27, %c0_28] : memref<1x64xf32, #tpu.memory_space<vmem>>, vector<1x64xf32>
    %37 = vector.broadcast %36 : vector<1x64xf32> to vector<24x64xf32>
    %38 = arith.addf %35, %37 : vector<24x64xf32>
    %cst_29 = arith.constant 0.000000e+00 : f32
    %39 = vector.broadcast %cst_29 : f32 to vector<24x64xf32>
    %40 = arith.maximumf %38, %39 : vector<24x64xf32>
    %41 = arith.truncf %40 : vector<24x64xf32> to vector<24x64xbf16>
    %c0_30 = arith.constant 0 : index
    %c0_31 = arith.constant 0 : index
    %42 = vector.load %arg12[%c0_30, %c0_31] : memref<64x128xbf16, #tpu.memory_space<vmem>>, vector<64x128xbf16>
    %cst_32 = arith.constant dense<0.000000e+00> : vector<24x128xf32>
    %43 = tpu.matmul %41, %42, %cst_32 {dimension_numbers = #tpu.dot_dimension_numbers<[1], [0], [0], [1], [0, 0, 1, 1], [], []>} : vector<24x64xbf16>, vector<64x128xbf16>, vector<24x128xf32> -> vector<24x128xf32>
    %c0_33 = arith.constant 0 : index
    %c0_34 = arith.constant 0 : index
    %44 = vector.load %arg13[%c0_33, %c0_34] : memref<1x128xf32, #tpu.memory_space<vmem>>, vector<1x128xf32>
    %45 = vector.broadcast %44 : vector<1x128xf32> to vector<24x128xf32>
    %46 = arith.addf %43, %45 : vector<24x128xf32>
    %cst_35 = arith.constant 0.000000e+00 : f32
    %47 = vector.broadcast %cst_35 : f32 to vector<24x128xf32>
    %48 = arith.maximumf %46, %47 : vector<24x128xf32>
    %49 = arith.truncf %48 : vector<24x128xf32> to vector<24x128xbf16>
    %c0_36 = arith.constant 0 : index
    %c0_37 = arith.constant 0 : index
    %50 = vector.load %arg14[%c0_36, %c0_37] : memref<128x784xbf16, #tpu.memory_space<vmem>>, vector<128x784xbf16>
    %cst_38 = arith.constant dense<0.000000e+00> : vector<24x784xf32>
    %51 = tpu.matmul %49, %50, %cst_38 {dimension_numbers = #tpu.dot_dimension_numbers<[1], [0], [0], [1], [0, 0, 1, 1], [], []>} : vector<24x128xbf16>, vector<128x784xbf16>, vector<24x784xf32> -> vector<24x784xf32>
    %c0_39 = arith.constant 0 : index
    %c0_40 = arith.constant 0 : index
    %52 = vector.load %arg15[%c0_39, %c0_40] : memref<1x784xf32, #tpu.memory_space<vmem>>, vector<1x784xf32>
    %53 = vector.broadcast %52 : vector<1x784xf32> to vector<24x784xf32>
    %54 = arith.addf %51, %53 : vector<24x784xf32>
    %55 = math.tanh %54 : vector<24x784xf32>
    %c0_41 = arith.constant 0 : index
    %c0_42 = arith.constant 0 : index
    %56 = vector.load %arg16[%c0_41, %c0_42] : memref<24x784xf32, #tpu.memory_space<vmem>>, vector<24x784xf32>
    tpu.vector_store %arg16[%c0_41, %c0_42], %55 {strides = array<i32>} : memref<24x784xf32, #tpu.memory_space<vmem>>, vector<24x784xf32>,
    return
  }
  func.func @transform_0(%arg0: i32) -> (i32, i32) {
    %c0_i32 = arith.constant 0 : i32
    %c0_i32_0 = arith.constant 0 : i32
    return %arg0, %c0_i32 : i32, i32
  }
  func.func @transform_1(%arg0: i32) -> (i32, i32) {
    %c0_i32 = arith.constant 0 : i32
    %c0_i32_0 = arith.constant 0 : i32
    %c0_i32_1 = arith.constant 0 : i32
    return %c0_i32, %c0_i32_0 : i32, i32
  }
  func.func @transform_2(%arg0: i32) -> (i32, i32) {
    %c0_i32 = arith.constant 0 : i32
    %c0_i32_0 = arith.constant 0 : i32
    %c0_i32_1 = arith.constant 0 : i32
    return %c0_i32, %c0_i32_0 : i32, i32
  }
  func.func @transform_3(%arg0: i32) -> (i32, i32) {
    %c0_i32 = arith.constant 0 : i32
    %c0_i32_0 = arith.constant 0 : i32
    %c0_i32_1 = arith.constant 0 : i32
    return %c0_i32, %c0_i32_0 : i32, i32
  }
  func.func @transform_4(%arg0: i32) -> (i32, i32) {
    %c0_i32 = arith.constant 0 : i32
    %c0_i32_0 = arith.constant 0 : i32
    %c0_i32_1 = arith.constant 0 : i32
    return %c0_i32, %c0_i32_0 : i32, i32
  }
  func.func @transform_5(%arg0: i32) -> (i32, i32) {
    %c0_i32 = arith.constant 0 : i32
    %c0_i32_0 = arith.constant 0 : i32
    %c0_i32_1 = arith.constant 0 : i32
    return %c0_i32, %c0_i32_0 : i32, i32
  }
  func.func @transform_6(%arg0: i32) -> (i32, i32) {
    %c0_i32 = arith.constant 0 : i32
    %c0_i32_0 = arith.constant 0 : i32
    %c0_i32_1 = arith.constant 0 : i32
    return %c0_i32, %c0_i32_0 : i32, i32
  }
  func.func @transform_7(%arg0: i32) -> (i32, i32) {
    %c0_i32 = arith.constant 0 : i32
    %c0_i32_0 = arith.constant 0 : i32
    %c0_i32_1 = arith.constant 0 : i32
    return %c0_i32, %c0_i32_0 : i32, i32
  }
  func.func @transform_8(%arg0: i32) -> (i32, i32) {
    %c0_i32 = arith.constant 0 : i32
    %c0_i32_0 = arith.constant 0 : i32
    %c0_i32_1 = arith.constant 0 : i32
    return %c0_i32, %c0_i32_0 : i32, i32
  }
  func.func @transform_9(%arg0: i32) -> (i32, i32) {
    %c0_i32 = arith.constant 0 : i32
    %c0_i32_0 = arith.constant 0 : i32
    %c0_i32_1 = arith.constant 0 : i32
    return %c0_i32, %c0_i32_0 : i32, i32
  }
  func.func @transform_10(%arg0: i32) -> (i32, i32) {
    %c0_i32 = arith.constant 0 : i32
    %c0_i32_0 = arith.constant 0 : i32
    %c0_i32_1 = arith.constant 0 : i32
    return %c0_i32, %c0_i32_0 : i32, i32
  }
  func.func @transform_11(%arg0: i32) -> (i32, i32) {
    %c0_i32 = arith.constant 0 : i32
    %c0_i32_0 = arith.constant 0 : i32
    %c0_i32_1 = arith.constant 0 : i32
    return %c0_i32, %c0_i32_0 : i32, i32
  }
  func.func @transform_12(%arg0: i32) -> (i32, i32) {
    %c0_i32 = arith.constant 0 : i32
    %c0_i32_0 = arith.constant 0 : i32
    %c0_i32_1 = arith.constant 0 : i32
    return %c0_i32, %c0_i32_0 : i32, i32
  }
  func.func @transform_13(%arg0: i32) -> (i32, i32) {
    %c0_i32 = arith.constant 0 : i32
    %c0_i32_0 = arith.constant 0 : i32
    %c0_i32_1 = arith.constant 0 : i32
    return %c0_i32, %c0_i32_0 : i32, i32
  }
  func.func @transform_14(%arg0: i32) -> (i32, i32) {
    %c0_i32 = arith.constant 0 : i32
    %c0_i32_0 = arith.constant 0 : i32
    %c0_i32_1 = arith.constant 0 : i32
    return %c0_i32, %c0_i32_0 : i32, i32
  }
  func.func @transform_15(%arg0: i32) -> (i32, i32) {
    %c0_i32 = arith.constant 0 : i32
    %c0_i32_0 = arith.constant 0 : i32
    return %arg0, %c0_i32 : i32, i32
  }
}

</mosaic_0001>

<llo_original>
// kernel: autoencoder_forward.1
$region0: #{autoencoder_forward.1}
  #allocation0 [shape = 'u32[]', space=smem, size = 0x4, offset = 0x4, fixed_abs, tag = 'smem constant byte address 0x4 - core index']
  #allocation1 [shape = 'u32[72,128]{1,0:T(1,128)}', space=vmem, size = 0x9000, scoped, tag = 'internal scratch']
  %s0 = inlined_call_operand.vmem [shape: f32[48,784], index: 0, kind: input, shape index: {}]
  %s1 = inlined_call_operand.vmem [shape: bf16[784,128], index: 1, kind: input, shape index: {}]
  %s2 = inlined_call_operand.vmem [shape: f32[1,128], index: 2, kind: input, shape index: {}]
  %s3 = inlined_call_operand.vmem [shape: bf16[128,64], index: 3, kind: input, shape index: {}]
  %s4 = inlined_call_operand.vmem [shape: f32[1,64], index: 4, kind: input, shape index: {}]
  %s5 = inlined_call_operand.vmem [shape: bf16[64,12], index: 5, kind: input, shape index: {}]
  %s6 = inlined_call_operand.vmem [shape: f32[1,12], index: 6, kind: input, shape index: {}]
  %s7 = inlined_call_operand.vmem [shape: bf16[12,12], index: 7, kind: input, shape index: {}]
  %s8 = inlined_call_operand.vmem [shape: f32[1,12], index: 8, kind: input, shape index: {}]
  %s9 = inlined_call_operand.vmem [shape: bf16[12,64], index: 9, kind: input, shape index: {}]
  %s10 = inlined_call_operand.vmem [shape: f32[1,64], index: 10, kind: input, shape index: {}]
  %s11 = inlined_call_operand.vmem [shape: bf16[64,128], index: 11, kind: input, shape index: {}]
  %s12 = inlined_call_operand.vmem [shape: f32[1,128], index: 12, kind: input, shape index: {}]
  %s13 = inlined_call_operand.vmem [shape: bf16[128,784], index: 13, kind: input, shape index: {}]
  %s14 = inlined_call_operand.vmem [shape: f32[1,784], index: 14, kind: input, shape index: {}]
  %s15 = inlined_call_operand.vmem [shape: f32[48,784], index: 15, kind: output, shape index: {}]
  %s16 = sld [smem:[#allocation0]]
  $region93: #{autoencoder_forward.1} parent=0
    _
  %s18 = ssub.s32 1, %s16
  %s19 = scalar_select 0, %s18, %s16
  loop: start=0, step=1, limit=4
  $region2: #{autoencoder_forward.1} parent=0 // loop_pre_header
    _
  $region3: #{autoencoder_forward.1} parent=0 // loop_header
    %s21 = sphi 0, %s25
    %p22 = scmp.ge.s32.totalorder %s21, 4
    %s31 = sphi 0, %s33
    %s34 = sphi 0, %s31
    %s35 = sphi 0, %s34
    %s51 = sphi 0, %s35
    %s55 = sphi 0, %s55
    %s57 = sphi 0, %s55
    %s58 = sphi 0, %s57
    %s72 = sphi 0, %s58
    %s76 = sphi 0, %s76
    %s78 = sphi 0, %s76
    %s79 = sphi 0, %s78
    %s93 = sphi 0, %s79
    %s97 = sphi 0, %s97
    %s99 = sphi 0, %s97
    %s100 = sphi 0, %s99
    %s114 = sphi 0, %s100
    %s118 = sphi 0, %s118
    %s120 = sphi 0, %s118
    %s121 = sphi 0, %s120
    %s135 = sphi 0, %s121
    %s139 = sphi 0, %s139
    %s141 = sphi 0, %s139
    %s142 = sphi 0, %s141
    %s156 = sphi 0, %s142
    %s160 = sphi 0, %s160
    %s162 = sphi 0, %s160
    %s163 = sphi 0, %s162
    %s177 = sphi 0, %s163
    %s181 = sphi 0, %s181
    %s183 = sphi 0, %s181
    %s184 = sphi 0, %s183
    %s198 = sphi 0, %s184
    %s202 = sphi 0, %s202
    %s204 = sphi 0, %s202
    %s205 = sphi 0, %s204
    %s219 = sphi 0, %s205
    %s223 = sphi 0, %s223
    %s225 = sphi 0, %s223
    %s226 = sphi 0, %s225
    %s240 = sphi 0, %s226
    %s244 = sphi 0, %s244
    %s246 = sphi 0, %s244
    %s247 = sphi 0, %s246
    %s261 = sphi 0, %s247
    %s265 = sphi 0, %s265
    %s267 = sphi 0, %s265
    %s268 = sphi 0, %s267
    %s282 = sphi 0, %s268
    %s286 = sphi 0, %s286
    %s288 = sphi 0, %s286
    %s289 = sphi 0, %s288
    %s303 = sphi 0, %s289
    %s307 = sphi 0, %s307
    %s309 = sphi 0, %s307
    %s310 = sphi 0, %s309
    %s324 = sphi 0, %s310
    %s328 = sphi 0, %s328
    %s330 = sphi 0, %s328
    %s331 = sphi 0, %s330
    %s345 = sphi 0, %s331
    %s351 = sphi 0, %s353
    %s354 = sphi 0, %s351
    %s355 = sphi 0, %s354
    %s371 = sphi 0, %s355
  $region4: #{autoencoder_forward.1} parent=0 // loop_header_branch
    %24 = sbr.rel (%p22) target = $region8
  $region5: #{autoencoder_forward.1} parent=0 // loop_body
    %s26 = ssub.s32 %s21, 1
    %s27 = ssub.s32 %s21, 2
    %s28 = sadd.s32 %s21, 1
    %s29 = ssub.s32 %s21, %s28
    %p30 = scmp.eq.s32.totalorder %s29, 0
    %s32 = sadd.s32 %s31, 1
    %s33 = scalar_select %p30, %s31, %s32
    %p36 = pneg %p30
    %p37 = scmp.eq.s32.totalorder %s21, 1
    %p38 = por %p36, %p37
    %p39 = scmp.ne.s32.totalorder %s31, %s34
    %p40 = scmp.eq.s32.totalorder %s21, 0
    %p41 = por %p39, %p40
    %p42 = scmp.ne.s32.totalorder %s31, %s34
    %p43 = scmp.eq.s32.totalorder %s26, 1
    %p44 = por %p42, %p43
    %p45 = scmp.ne.s32.totalorder %s34, %s35
    %p46 = scmp.eq.s32.totalorder %s26, 0
    %p47 = por %p45, %p46
    %p48 = scmp.ne.s32.totalorder %s34, %s35
    %p49 = scmp.eq.s32.totalorder %s27, 1
    %p50 = por %p48, %p49
    %p52 = scmp.ne.s32.totalorder %s35, %s51
    %p53 = scmp.eq.s32.totalorder %s27, 0
    %p54 = por %p52, %p53
    %s56 = sadd.s32 %s55, 1
    %p59 = scmp.eq.s32.totalorder %s21, 1
    %p60 = scmp.ne.s32.totalorder %s55, %s57
    %p61 = scmp.eq.s32.totalorder %s21, 0
    %p62 = por %p60, %p61
    %p63 = scmp.ne.s32.totalorder %s55, %s57
    %p64 = scmp.eq.s32.totalorder %s26, 1
    %p65 = por %p63, %p64
    %p66 = scmp.ne.s32.totalorder %s57, %s58
    %p67 = scmp.eq.s32.totalorder %s26, 0
    %p68 = por %p66, %p67
    %p69 = scmp.ne.s32.totalorder %s57, %s58
    %p70 = scmp.eq.s32.totalorder %s27, 1
    %p71 = por %p69, %p70
    %p73 = scmp.ne.s32.totalorder %s58, %s72
    %p74 = scmp.eq.s32.totalorder %s27, 0
    %p75 = por %p73, %p74
    %s77 = sadd.s32 %s76, 1
    %p80 = scmp.eq.s32.totalorder %s21, 1
    %p81 = scmp.ne.s32.totalorder %s76, %s78
    %p82 = scmp.eq.s32.totalorder %s21, 0
    %p83 = por %p81, %p82
    %p84 = scmp.ne.s32.totalorder %s76, %s78
    %p85 = scmp.eq.s32.totalorder %s26, 1
    %p86 = por %p84, %p85
    %p87 = scmp.ne.s32.totalorder %s78, %s79
    %p88 = scmp.eq.s32.totalorder %s26, 0
    %p89 = por %p87, %p88
    %p90 = scmp.ne.s32.totalorder %s78, %s79
    %p91 = scmp.eq.s32.totalorder %s27, 1
    %p92 = por %p90, %p91
    %p94 = scmp.ne.s32.totalorder %s79, %s93
    %p95 = scmp.eq.s32.totalorder %s27, 0
    %p96 = por %p94, %p95
    %s98 = sadd.s32 %s97, 1
    %p101 = scmp.eq.s32.totalorder %s21, 1
    %p102 = scmp.ne.s32.totalorder %s97, %s99
    %p103 = scmp.eq.s32.totalorder %s21, 0
    %p104 = por %p102, %p103
    %p105 = scmp.ne.s32.totalorder %s97, %s99
    %p106 = scmp.eq.s32.totalorder %s26, 1
    %p107 = por %p105, %p106
    %p108 = scmp.ne.s32.totalorder %s99, %s100
    %p109 = scmp.eq.s32.totalorder %s26, 0
    %p110 = por %p108, %p109
    %p111 = scmp.ne.s32.totalorder %s99, %s100
    %p112 = scmp.eq.s32.totalorder %s27, 1
    %p113 = por %p111, %p112
    %p115 = scmp.ne.s32.totalorder %s100, %s114
    %p116 = scmp.eq.s32.totalorder %s27, 0
    %p117 = por %p115, %p116
    %s119 = sadd.s32 %s118, 1
    %p122 = scmp.eq.s32.totalorder %s21, 1
    %p123 = scmp.ne.s32.totalorder %s118, %s120
    %p124 = scmp.eq.s32.totalorder %s21, 0
    %p125 = por %p123, %p124
    %p126 = scmp.ne.s32.totalorder %s118, %s120
    %p127 = scmp.eq.s32.totalorder %s26, 1
    %p128 = por %p126, %p127
    %p129 = scmp.ne.s32.totalorder %s120, %s121
    %p130 = scmp.eq.s32.totalorder %s26, 0
    %p131 = por %p129, %p130
    %p132 = scmp.ne.s32.totalorder %s120, %s121
    %p133 = scmp.eq.s32.totalorder %s27, 1
    %p134 = por %p132, %p133
    %p136 = scmp.ne.s32.totalorder %s121, %s135
    %p137 = scmp.eq.s32.totalorder %s27, 0
    %p138 = por %p136, %p137
    %s140 = sadd.s32 %s139, 1
    %p143 = scmp.eq.s32.totalorder %s21, 1
    %p144 = scmp.ne.s32.totalorder %s139, %s141
    %p145 = scmp.eq.s32.totalorder %s21, 0
    %p146 = por %p144, %p145
    %p147 = scmp.ne.s32.totalorder %s139, %s141
    %p148 = scmp.eq.s32.totalorder %s26, 1
    %p149 = por %p147, %p148
    %p150 = scmp.ne.s32.totalorder %s141, %s142
    %p151 = scmp.eq.s32.totalorder %s26, 0
    %p152 = por %p150, %p151
    %p153 = scmp.ne.s32.totalorder %s141, %s142
    %p154 = scmp.eq.s32.totalorder %s27, 1
    %p155 = por %p153, %p154
    %p157 = scmp.ne.s32.totalorder %s142, %s156
    %p158 = scmp.eq.s32.totalorder %s27, 0
    %p159 = por %p157, %p158
    %s161 = sadd.s32 %s160, 1
    %p164 = scmp.eq.s32.totalorder %s21, 1
    %p165 = scmp.ne.s32.totalorder %s160, %s162
    %p166 = scmp.eq.s32.totalorder %s21, 0
    %p167 = por %p165, %p166
    %p168 = scmp.ne.s32.totalorder %s160, %s162
    %p169 = scmp.eq.s32.totalorder %s26, 1
    %p170 = por %p168, %p169
    %p171 = scmp.ne.s32.totalorder %s162, %s163
    %p172 = scmp.eq.s32.totalorder %s26, 0
    %p173 = por %p171, %p172
    %p174 = scmp.ne.s32.totalorder %s162, %s163
    %p175 = scmp.eq.s32.totalorder %s27, 1
    %p176 = por %p174, %p175
    %p178 = scmp.ne.s32.totalorder %s163, %s177
    %p179 = scmp.eq.s32.totalorder %s27, 0
    %p180 = por %p178, %p179
    %s182 = sadd.s32 %s181, 1
    %p185 = scmp.eq.s32.totalorder %s21, 1
    %p186 = scmp.ne.s32.totalorder %s181, %s183
    %p187 = scmp.eq.s32.totalorder %s21, 0
    %p188 = por %p186, %p187
    %p189 = scmp.ne.s32.totalorder %s181, %s183
    %p190 = scmp.eq.s32.totalorder %s26, 1
    %p191 = por %p189, %p190
    %p192 = scmp.ne.s32.totalorder %s183, %s184
    %p193 = scmp.eq.s32.totalorder %s26, 0
    %p194 = por %p192, %p193
    %p195 = scmp.ne.s32.totalorder %s183, %s184
    %p196 = scmp.eq.s32.totalorder %s27, 1
    %p197 = por %p195, %p196
    %p199 = scmp.ne.s32.totalorder %s184, %s198
    %p200 = scmp.eq.s32.totalorder %s27, 0
    %p201 = por %p199, %p200
    %s203 = sadd.s32 %s202, 1
    %p206 = scmp.eq.s32.totalorder %s21, 1
    %p207 = scmp.ne.s32.totalorder %s202, %s204
    %p208 = scmp.eq.s32.totalorder %s21, 0
    %p209 = por %p207, %p208
    %p210 = scmp.ne.s32.totalorder %s202, %s204
    %p211 = scmp.eq.s32.totalorder %s26, 1
    %p212 = por %p210, %p211
    %p213 = scmp.ne.s32.totalorder %s204, %s205
    %p214 = scmp.eq.s32.totalorder %s26, 0
    %p215 = por %p213, %p214
    %p216 = scmp.ne.s32.totalorder %s204, %s205
    %p217 = scmp.eq.s32.totalorder %s27, 1
    %p218 = por %p216, %p217
    %p220 = scmp.ne.s32.totalorder %s205, %s219
    %p221 = scmp.eq.s32.totalorder %s27, 0
    %p222 = por %p220, %p221
    %s224 = sadd.s32 %s223, 1
    %p227 = scmp.eq.s32.totalorder %s21, 1
    %p228 = scmp.ne.s32.totalorder %s223, %s225
    %p229 = scmp.eq.s32.totalorder %s21, 0
    %p230 = por %p228, %p229
    %p231 = scmp.ne.s32.totalorder %s223, %s225
    %p232 = scmp.eq.s32.totalorder %s26, 1
    %p233 = por %p231, %p232
    %p234 = scmp.ne.s32.totalorder %s225, %s226
    %p235 = scmp.eq.s32.totalorder %s26, 0
    %p236 = por %p234, %p235
    %p237 = scmp.ne.s32.totalorder %s225, %s226
    %p238 = scmp.eq.s32.totalorder %s27, 1
    %p239 = por %p237, %p238
    %p241 = scmp.ne.s32.totalorder %s226, %s240
    %p242 = scmp.eq.s32.totalorder %s27, 0
    %p243 = por %p241, %p242
    %s245 = sadd.s32 %s244, 1
    %p248 = scmp.eq.s32.totalorder %s21, 1
    %p249 = scmp.ne.s32.totalorder %s244, %s246
    %p250 = scmp.eq.s32.totalorder %s21, 0
    %p251 = por %p249, %p250
    %p252 = scmp.ne.s32.totalorder %s244, %s246
    %p253 = scmp.eq.s32.totalorder %s26, 1
    %p254 = por %p252, %p253
    %p255 = scmp.ne.s32.totalorder %s246, %s247
    %p256 = scmp.eq.s32.totalorder %s26, 0
    %p257 = por %p255, %p256
    %p258 = scmp.ne.s32.totalorder %s246, %s247
    %p259 = scmp.eq.s32.totalorder %s27, 1
    %p260 = por %p258, %p259
    %p262 = scmp.ne.s32.totalorder %s247, %s261
    %p263 = scmp.eq.s32.totalorder %s27, 0
    %p264 = por %p262, %p263
    %s266 = sadd.s32 %s265, 1
    %p269 = scmp.eq.s32.totalorder %s21, 1
    %p270 = scmp.ne.s32.totalorder %s265, %s267
    %p271 = scmp.eq.s32.totalorder %s21, 0
    %p272 = por %p270, %p271
    %p273 = scmp.ne.s32.totalorder %s265, %s267
    %p274 = scmp.eq.s32.totalorder %s26, 1
    %p275 = por %p273, %p274
    %p276 = scmp.ne.s32.totalorder %s267, %s268
    %p277 = scmp.eq.s32.totalorder %s26, 0
    %p278 = por %p276, %p277
    %p279 = scmp.ne.s32.totalorder %s267, %s268
    %p280 = scmp.eq.s32.totalorder %s27, 1
    %p281 = por %p279, %p280
    %p283 = scmp.ne.s32.totalorder %s268, %s282
    %p284 = scmp.eq.s32.totalorder %s27, 0
    %p285 = por %p283, %p284
    %s287 = sadd.s32 %s286, 1
    %p290 = scmp.eq.s32.totalorder %s21, 1
    %p291 = scmp.ne.s32.totalorder %s286, %s288
    %p292 = scmp.eq.s32.totalorder %s21, 0
    %p293 = por %p291, %p292
    %p294 = scmp.ne.s32.totalorder %s286, %s288
    %p295 = scmp.eq.s32.totalorder %s26, 1
    %p296 = por %p294, %p295
    %p297 = scmp.ne.s32.totalorder %s288, %s289
    %p298 = scmp.eq.s32.totalorder %s26, 0
    %p299 = por %p297, %p298
    %p300 = scmp.ne.s32.totalorder %s288, %s289
    %p301 = scmp.eq.s32.totalorder %s27, 1
    %p302 = por %p300, %p301
    %p304 = scmp.ne.s32.totalorder %s289, %s303
    %p305 = scmp.eq.s32.totalorder %s27, 0
    %p306 = por %p304, %p305
    %s308 = sadd.s32 %s307, 1
    %p311 = scmp.eq.s32.totalorder %s21, 1
    %p312 = scmp.ne.s32.totalorder %s307, %s309
    %p313 = scmp.eq.s32.totalorder %s21, 0
    %p314 = por %p312, %p313
    %p315 = scmp.ne.s32.totalorder %s307, %s309
    %p316 = scmp.eq.s32.totalorder %s26, 1
    %p317 = por %p315, %p316
    %p318 = scmp.ne.s32.totalorder %s309, %s310
    %p319 = scmp.eq.s32.totalorder %s26, 0
    %p320 = por %p318, %p319
    %p321 = scmp.ne.s32.totalorder %s309, %s310
    %p322 = scmp.eq.s32.totalorder %s27, 1
    %p323 = por %p321, %p322
    %p325 = scmp.ne.s32.totalorder %s310, %s324
    %p326 = scmp.eq.s32.totalorder %s27, 0
    %p327 = por %p325, %p326
    %s329 = sadd.s32 %s328, 1
    %p332 = scmp.eq.s32.totalorder %s21, 1
    %p333 = scmp.ne.s32.totalorder %s328, %s330
    %p334 = scmp.eq.s32.totalorder %s21, 0
    %p335 = por %p333, %p334
    %p336 = scmp.ne.s32.totalorder %s328, %s330
    %p337 = scmp.eq.s32.totalorder %s26, 1
    %p338 = por %p336, %p337
    %p339 = scmp.ne.s32.totalorder %s330, %s331
    %p340 = scmp.eq.s32.totalorder %s26, 0
    %p341 = por %p339, %p340
    %p342 = scmp.ne.s32.totalorder %s330, %s331
    %p343 = scmp.eq.s32.totalorder %s27, 1
    %p344 = por %p342, %p343
    %p346 = scmp.ne.s32.totalorder %s331, %s345
    %p347 = scmp.eq.s32.totalorder %s27, 0
    %p348 = por %p346, %p347
    %s349 = ssub.s32 %s21, %s28
    %p350 = scmp.eq.s32.totalorder %s349, 0
    %s352 = sadd.s32 %s351, 1
    %s353 = scalar_select %p350, %s351, %s352
    %p356 = pneg %p350
    %p357 = scmp.eq.s32.totalorder %s21, 1
    %p358 = por %p356, %p357
    %p359 = scmp.ne.s32.totalorder %s351, %s354
    %p360 = scmp.eq.s32.totalorder %s21, 0
    %p361 = por %p359, %p360
    %p362 = scmp.ne.s32.totalorder %s351, %s354
    %p363 = scmp.eq.s32.totalorder %s26, 1
    %p364 = por %p362, %p363
    %p365 = scmp.ne.s32.totalorder %s354, %s355
    %p366 = scmp.eq.s32.totalorder %s26, 0
    %p367 = por %p365, %p366
    %p368 = scmp.ne.s32.totalorder %s354, %s355
    %p369 = scmp.eq.s32.totalorder %s27, 1
    %p370 = por %p368, %p369
    %p372 = scmp.ne.s32.totalorder %s355, %s371
    %p373 = scmp.eq.s32.totalorder %s27, 0
    %p374 = por %p372, %p373
    %p375 = scmp.le.s32.totalorder 1, %s21
    %p376 = scmp.lt.s32.totalorder %s21, 3
    %p377 = pnand %p375, %p376
    %p378 = pneg %p377
    // Predicated region
    $region9: #{autoencoder_forward.1} parent=5 // pred_check
      _
    $region10: #{autoencoder_forward.1} parent=5 // pred_check_branch
      %380 = sbr.rel (%p377) target = $region12
    $region11: #{autoencoder_forward.1} parent=5 // pred_region
      %s381 = ssub.s32 %s21, 1
      // Predicated region
      $region13: #{autoencoder_forward.1} parent=11 // pred_check
        %p382 = pneg %p68
      $region14: #{autoencoder_forward.1} parent=11 // pred_check_branch
        %384 = sbr.rel (%p382) target = $region16
      $region15: #{autoencoder_forward.1} parent=11 // pred_region
        _
      $region16: #{autoencoder_forward.1} parent=11 // pred_fallthru
        _
      // Predicated region
      $region17: #{autoencoder_forward.1} parent=11 // pred_check
        %p385 = pneg %p89
      $region18: #{autoencoder_forward.1} parent=11 // pred_check_branch
        %387 = sbr.rel (%p385) target = $region20
      $region19: #{autoencoder_forward.1} parent=11 // pred_region
        _
      $region20: #{autoencoder_forward.1} parent=11 // pred_fallthru
        _
      // Predicated region
      $region21: #{autoencoder_forward.1} parent=11 // pred_check
        %p388 = pneg %p110
      $region22: #{autoencoder_forward.1} parent=11 // pred_check_branch
        %390 = sbr.rel (%p388) target = $region24
      $region23: #{autoencoder_forward.1} parent=11 // pred_region
        _
      $region24: #{autoencoder_forward.1} parent=11 // pred_fallthru
        _
      // Predicated region
      $region25: #{autoencoder_forward.1} parent=11 // pred_check
        %p391 = pneg %p131
      $region26: #{autoencoder_forward.1} parent=11 // pred_check_branch
        %393 = sbr.rel (%p391) target = $region28
      $region27: #{autoencoder_forward.1} parent=11 // pred_region
        _
      $region28: #{autoencoder_forward.1} parent=11 // pred_fallthru
        _
      // Predicated region
      $region29: #{autoencoder_forward.1} parent=11 // pred_check
        %p394 = pneg %p152
      $region30: #{autoencoder_forward.1} parent=11 // pred_check_branch
        %396 = sbr.rel (%p394) target = $region32
      $region31: #{autoencoder_forward.1} parent=11 // pred_region
        _
      $region32: #{autoencoder_forward.1} parent=11 // pred_fallthru
        _
      // Predicated region
      $region33: #{autoencoder_forward.1} parent=11 // pred_check
        %p397 = pneg %p173
      $region34: #{autoencoder_forward.1} parent=11 // pred_check_branch
        %399 = sbr.rel (%p397) target = $region36
      $region35: #{autoencoder_forward.1} parent=11 // pred_region
        _
      $region36: #{autoencoder_forward.1} parent=11 // pred_fallthru
        _
      // Predicated region
      $region37: #{autoencoder_forward.1} parent=11 // pred_check
        %p400 = pneg %p194
      $region38: #{autoencoder_forward.1} parent=11 // pred_check_branch
        %402 = sbr.rel (%p400) target = $region40
      $region39: #{autoencoder_forward.1} parent=11 // pred_region
        _
      $region40: #{autoencoder_forward.1} parent=11 // pred_fallthru
        _
      // Predicated region
      $region41: #{autoencoder_forward.1} parent=11 // pred_check
        %p403 = pneg %p215
      $region42: #{autoencoder_forward.1} parent=11 // pred_check_branch
        %405 = sbr.rel (%p403) target = $region44
      $region43: #{autoencoder_forward.1} parent=11 // pred_region
        _
      $region44: #{autoencoder_forward.1} parent=11 // pred_fallthru
        _
      // Predicated region
      $region45: #{autoencoder_forward.1} parent=11 // pred_check
        %p406 = pneg %p236
      $region46: #{autoencoder_forward.1} parent=11 // pred_check_branch
        %408 = sbr.rel (%p406) target = $region48
      $region47: #{autoencoder_forward.1} parent=11 // pred_region
        _
      $region48: #{autoencoder_forward.1} parent=11 // pred_fallthru
        _
      // Predicated region
      $region49: #{autoencoder_forward.1} parent=11 // pred_check
        %p409 = pneg %p257
      $region50: #{autoencoder_forward.1} parent=11 // pred_check_branch
        %411 = sbr.rel (%p409) target = $region52
      $region51: #{autoencoder_forward.1} parent=11 // pred_region
        _
      $region52: #{autoencoder_forward.1} parent=11 // pred_fallthru
        _
      // Predicated region
      $region53: #{autoencoder_forward.1} parent=11 // pred_check
        %p412 = pneg %p278
      $region54: #{autoencoder_forward.1} parent=11 // pred_check_branch
        %414 = sbr.rel (%p412) target = $region56
      $region55: #{autoencoder_forward.1} parent=11 // pred_region
        _
      $region56: #{autoencoder_forward.1} parent=11 // pred_fallthru
        _
      // Predicated region
      $region57: #{autoencoder_forward.1} parent=11 // pred_check
        %p415 = pneg %p299
      $region58: #{autoencoder_forward.1} parent=11 // pred_check_branch
        %417 = sbr.rel (%p415) target = $region60
      $region59: #{autoencoder_forward.1} parent=11 // pred_region
        _
      $region60: #{autoencoder_forward.1} parent=11 // pred_fallthru
        _
      // Predicated region
      $region61: #{autoencoder_forward.1} parent=11 // pred_check
        %p418 = pneg %p320
      $region62: #{autoencoder_forward.1} parent=11 // pred_check_branch
        %420 = sbr.rel (%p418) target = $region64
      $region63: #{autoencoder_forward.1} parent=11 // pred_region
        _
      $region64: #{autoencoder_forward.1} parent=11 // pred_fallthru
        _
      // Predicated region
      $region65: #{autoencoder_forward.1} parent=11 // pred_check
        %p421 = pneg %p341
      $region66: #{autoencoder_forward.1} parent=11 // pred_check_branch
        %423 = sbr.rel (%p421) target = $region68
      $region67: #{autoencoder_forward.1} parent=11 // pred_region
        _
      $region68: #{autoencoder_forward.1} parent=11 // pred_fallthru
        _
    $region12: #{autoencoder_forward.1} parent=5 // pred_fallthru
      _
    %p424 = scmp.lt.s32.totalorder %s21, 2
    // Predicated region
    $region69: #{autoencoder_forward.1} parent=5 // pred_check
      %p425 = pneg %p424
    $region70: #{autoencoder_forward.1} parent=5 // pred_check_branch
      %427 = sbr.rel (%p425) target = $region72
    $region71: #{autoencoder_forward.1} parent=5 // pred_region
      // Predicated region
      $region73: #{autoencoder_forward.1} parent=71 // pred_check
        %p428 = pneg %p41
      $region74: #{autoencoder_forward.1} parent=71 // pred_check_branch
        %430 = sbr.rel (%p428) target = $region76
      $region75: #{autoencoder_forward.1} parent=71 // pred_region
        %s431 = smul.u32 3, %s21
        %p432 = scmp.lt.s32.totalorder %s431, 5
        %s433 = scalar_select %p432, %s431, 5
        %s434 = smul.addr %s433, 7
        %s435 = smul.addr %s434, 8
        %s436 = scalar_lea.vmem %s0, %s435
        %s437 = smul.u32 3, %s21
      $region76: #{autoencoder_forward.1} parent=71 // pred_fallthru
        _
    $region72: #{autoencoder_forward.1} parent=5 // pred_fallthru
      _
    %p438 = scmp.le.s32.totalorder 1, %s21
    %p439 = scmp.lt.s32.totalorder %s21, 3
    %p440 = pnand %p438, %p439
    %p441 = pneg %p440
    // Predicated region
    $region77: #{autoencoder_forward.1} parent=5 // pred_check
      _
    $region78: #{autoencoder_forward.1} parent=5 // pred_check_branch
      %443 = sbr.rel (%p440) target = $region80
    $region79: #{autoencoder_forward.1} parent=5 // pred_region
      %s444 = ssub.s32 %s21, 1
      %s445 = smul.u32 3, %s26
      %p446 = scmp.lt.s32.totalorder %s445, 5
      %s447 = scalar_select %p446, %s445, 5
      %s448 = smul.addr %s447, 7
      %s449 = smul.addr %s448, 8
      %s450 = scalar_lea.vmem %s0, %s449
      %p451 = pneg %p47
      %p452 = pneg %p44
      %p453 = pneg %p68
      %p454 = pneg %p65
      %p455 = pneg %p89
      %p456 = pneg %p86
      %p457 = pneg %p110
      %p458 = pneg %p107
      %p459 = pneg %p131
      %p460 = pneg %p128
      %p461 = pneg %p152
      %p462 = pneg %p149
      %p463 = pneg %p173
      %p464 = pneg %p170
      %p465 = pneg %p194
      %p466 = pneg %p191
      %p467 = pneg %p215
      %p468 = pneg %p212
      %p469 = pneg %p236
      %p470 = pneg %p233
      %p471 = pneg %p257
      %p472 = pneg %p254
      %p473 = pneg %p278
      %p474 = pneg %p275
      %p475 = pneg %p299
      %p476 = pneg %p296
      %p477 = pneg %p320
      %p478 = pneg %p317
      %p479 = pneg %p341
      %p480 = pneg %p338
      %p481 = pneg %p367
      %p482 = pneg %p364
      %s483 = smul.u32 3, %s26
      %p484 = scmp.lt.s32.totalorder %s483, 5
      %s485 = scalar_select %p484, %s483, 5
      %s486 = smul.addr %s485, 7
      %s487 = smul.addr %s486, 8
      %s488 = scalar_lea.vmem %s15, %s487
      %s489 = smul.u32 3, %s26
      %p490 = scmp.lt.s32.totalorder %s489, 5
      %s491 = scalar_select %p490, %s489, 5
      %s492 = smul.addr %s491, 7
      %s493 = smul.addr %s492, 8
      %s494 = scalar_lea.vmem %s0, %s493
      %s495 = smul.u32 3, %s26
      %s496 = smul.u32 3, %s26
      %p497 = scmp.lt.s32.totalorder %s496, 5
      %s498 = scalar_select %p497, %s496, 5
      %s499 = smul.addr %s498, 7
      %s500 = smul.addr %s499, 8
      %s501 = scalar_lea.vmem %s15, %s500
      %s502 = smul.u32 3, %s26
      %v504 = vld [vmem:[%s494] sm:$0xff]
      %v505 = vld [vmem:[%s494 + $0x8] sm:$0xff]
      %v506 = vld [vmem:[%s494 + $0x10] sm:$0xff]
      %v507 = vld [vmem:[%s494 + $0x18] sm:$0xff]
      %v508 = vld [vmem:[%s494 + $0x20] sm:$0xff]
      %v509 = vld [vmem:[%s494 + $0x28] sm:$0xff]
      %v510 = vld [vmem:[%s494 + $0x30] sm:$0xff]
      %v511 = vld [vmem:[%s494 + $0x38] sm:$0xff]
      %v512 = vld [vmem:[%s494 + $0x40] sm:$0xff]
      %v513 = vld [vmem:[%s494 + $0x48] sm:$0xff]
      %v514 = vld [vmem:[%s494 + $0x50] sm:$0xff]
      %v515 = vld [vmem:[%s494 + $0x58] sm:$0xff]
      %v516 = vld [vmem:[%s494 + $0x60] sm:$0xff]
      %v517 = vld [vmem:[%s494 + $0x68] sm:$0xff]
      %v518 = vld [vmem:[%s494 + $0x70] sm:$0xff]
      %v519 = vld [vmem:[%s494 + $0x78] sm:$0xff]
      %v520 = vld [vmem:[%s494 + $0x80] sm:$0xff]
      %v521 = vld [vmem:[%s494 + $0x88] sm:$0xff]
      %v522 = vld [vmem:[%s494 + $0x90] sm:$0xff]
      %v523 = vld [vmem:[%s494 + $0x98] sm:$0xff]
      %v524 = vld [vmem:[%s494 + $0xa0] sm:$0xff]
      %v525 = vpack.c.bf16 %v511, %v504
      %v526 = vpack.c.bf16 %v512, %v505
      %v527 = vpack.c.bf16 %v513, %v506
      %v528 = vpack.c.bf16 %v514, %v507
      %v529 = vpack.c.bf16 %v515, %v508
      %v530 = vpack.c.bf16 %v516, %v509
      %v531 = vpack.c.bf16 %v517, %v510
      %v532 = vpack.c.bf16 %v518, %v518
      %v533 = vpack.c.bf16 %v519, %v519
      %v534 = vpack.c.bf16 %v520, %v520
      %v535 = vpack.c.bf16 %v521, %v521
      %v536 = vpack.c.bf16 %v522, %v522
      %v537 = vpack.c.bf16 %v523, %v523
      %v538 = vpack.c.bf16 %v524, %v524
      %v539 = vld [vmem:[%s1] sm:$0xf]
      %v540 = vld [vmem:[%s1 + $0x4] sm:$0xf]
      %v541 = vld [vmem:[%s1 + $0x8] sm:$0xf]
      %v542 = vld [vmem:[%s1 + $0xc] sm:$0xf]
      %v543 = vld [vmem:[%s1 + $0x10] sm:$0xf]
      %v544 = vld [vmem:[%s1 + $0x14] sm:$0xf]
      %v545 = vld [vmem:[%s1 + $0x18] sm:$0xf]
      %v546 = vld [vmem:[%s1 + $0x1c] sm:$0xf]
      %v547 = vld [vmem:[%s1 + $0x20] sm:$0xf]
      %v548 = vld [vmem:[%s1 + $0x24] sm:$0xf]
      %v549 = vld [vmem:[%s1 + $0x28] sm:$0xf]
      %v550 = vld [vmem:[%s1 + $0x2c] sm:$0xf]
      %v551 = vld [vmem:[%s1 + $0x30] sm:$0xf]
      %v552 = vld [vmem:[%s1 + $0x34] sm:$0xf]
      %v553 = vld [vmem:[%s1 + $0x38] sm:$0xf]
      %v554 = vld [vmem:[%s1 + $0x3c] sm:$0xf]
      %v555 = vld [vmem:[%s1 + $0x40] sm:$0xf]
      %v556 = vld [vmem:[%s1 + $0x44] sm:$0xf]
      %v557 = vld [vmem:[%s1 + $0x48] sm:$0xf]
      %v558 = vld [vmem:[%s1 + $0x4c] sm:$0xf]
      %v559 = vld [vmem:[%s1 + $0x50] sm:$0xf]
      %v560 = vld [vmem:[%s1 + $0x54] sm:$0xf]
      %v561 = vld [vmem:[%s1 + $0x58] sm:$0xf]
      %v562 = vld [vmem:[%s1 + $0x5c] sm:$0xf]
      %v563 = vld [vmem:[%s1 + $0x60] sm:$0xf]
      %v564 = vld [vmem:[%s1 + $0x64] sm:$0xf]
      %v565 = vld [vmem:[%s1 + $0x68] sm:$0xf]
      %v566 = vld [vmem:[%s1 + $0x6c] sm:$0xf]
      %v567 = vld [vmem:[%s1 + $0x70] sm:$0xf]
      %v568 = vld [vmem:[%s1 + $0x74] sm:$0xf]
      %v569 = vld [vmem:[%s1 + $0x78] sm:$0xf]
      %v570 = vld [vmem:[%s1 + $0x7c] sm:$0xf]
      %v571 = vld [vmem:[%s1 + $0x80] sm:$0xf]
      %v572 = vld [vmem:[%s1 + $0x84] sm:$0xf]
      %v573 = vld [vmem:[%s1 + $0x88] sm:$0xf]
      %v574 = vld [vmem:[%s1 + $0x8c] sm:$0xf]
      %v575 = vld [vmem:[%s1 + $0x90] sm:$0xf]
      %v576 = vld [vmem:[%s1 + $0x94] sm:$0xf]
      %v577 = vld [vmem:[%s1 + $0x98] sm:$0xf]
      %v578 = vld [vmem:[%s1 + $0x9c] sm:$0xf]
      %v579 = vld [vmem:[%s1 + $0xa0] sm:$0xf]
      %v580 = vld [vmem:[%s1 + $0xa4] sm:$0xf]
      %v581 = vld [vmem:[%s1 + $0xa8] sm:$0xf]
      %v582 = vld [vmem:[%s1 + $0xac] sm:$0xf]
      %v583 = vld [vmem:[%s1 + $0xb0] sm:$0xf]
      %v584 = vld [vmem:[%s1 + $0xb4] sm:$0xf]
      %v585 = vld [vmem:[%s1 + $0xb8] sm:$0xf]
      %v586 = vld [vmem:[%s1 + $0xbc] sm:$0xf]
      %v587 = vld [vmem:[%s1 + $0xc0] sm:$0xf]
      %v588 = vld [vmem:[%s1 + $0xc4] sm:$0xf]
      %v589 = vld [vmem:[%s1 + $0xc8] sm:$0xf]
      %v590 = vld [vmem:[%s1 + $0xcc] sm:$0xf]
      %v591 = vld [vmem:[%s1 + $0xd0] sm:$0xf]
      %v592 = vld [vmem:[%s1 + $0xd4] sm:$0xf]
      %v593 = vld [vmem:[%s1 + $0xd8] sm:$0xf]
      %v594 = vld [vmem:[%s1 + $0xdc] sm:$0xf]
      %v595 = vld [vmem:[%s1 + $0xe0] sm:$0xf]
      %v596 = vld [vmem:[%s1 + $0xe4] sm:$0xf]
      %v597 = vld [vmem:[%s1 + $0xe8] sm:$0xf]
      %v598 = vld [vmem:[%s1 + $0xec] sm:$0xf]
      %v599 = vld [vmem:[%s1 + $0xf0] sm:$0xf]
      %v600 = vld [vmem:[%s1 + $0xf4] sm:$0xf]
      %v601 = vld [vmem:[%s1 + $0xf8] sm:$0xf]
      %v602 = vld [vmem:[%s1 + $0xfc] sm:$0xf]
      %v603 = vld [vmem:[%s1 + $0x100] sm:$0xf]
      %v604 = vld [vmem:[%s1 + $0x104] sm:$0xf]
      %v605 = vld [vmem:[%s1 + $0x108] sm:$0xf]
      %v606 = vld [vmem:[%s1 + $0x10c] sm:$0xf]
      %v607 = vld [vmem:[%s1 + $0x110] sm:$0xf]
      %v608 = vld [vmem:[%s1 + $0x114] sm:$0xf]
      %v609 = vld [vmem:[%s1 + $0x118] sm:$0xf]
      %v610 = vld [vmem:[%s1 + $0x11c] sm:$0xf]
      %v611 = vld [vmem:[%s1 + $0x120] sm:$0xf]
      %v612 = vld [vmem:[%s1 + $0x124] sm:$0xf]
      %v613 = vld [vmem:[%s1 + $0x128] sm:$0xf]
      %v614 = vld [vmem:[%s1 + $0x12c] sm:$0xf]
      %v615 = vld [vmem:[%s1 + $0x130] sm:$0xf]
      %v616 = vld [vmem:[%s1 + $0x134] sm:$0xf]
      %v617 = vld [vmem:[%s1 + $0x138] sm:$0xf]
      %v618 = vld [vmem:[%s1 + $0x13c] sm:$0xf]
      %v619 = vld [vmem:[%s1 + $0x140] sm:$0xf]
      %v620 = vld [vmem:[%s1 + $0x144] sm:$0xf]
      %v621 = vld [vmem:[%s1 + $0x148] sm:$0xf]
      %v622 = vld [vmem:[%s1 + $0x14c] sm:$0xf]
      %v623 = vld [vmem:[%s1 + $0x150] sm:$0xf]
      %v624 = vld [vmem:[%s1 + $0x154] sm:$0xf]
      %v625 = vld [vmem:[%s1 + $0x158] sm:$0xf]
      %v626 = vld [vmem:[%s1 + $0x15c] sm:$0xf]
      %v627 = vld [vmem:[%s1 + $0x160] sm:$0xf]
      %v628 = vld [vmem:[%s1 + $0x164] sm:$0xf]
      %v629 = vld [vmem:[%s1 + $0x168] sm:$0xf]
      %v630 = vld [vmem:[%s1 + $0x16c] sm:$0xf]
      %v631 = vld [vmem:[%s1 + $0x170] sm:$0xf]
      %v632 = vld [vmem:[%s1 + $0x174] sm:$0xf]
      %v633 = vld [vmem:[%s1 + $0x178] sm:$0xf]
      %v634 = vld [vmem:[%s1 + $0x17c] sm:$0xf]
      %v635 = vld [vmem:[%s1 + $0x180] sm:$0xf]
      %v636 = vld [vmem:[%s1 + $0x184] sm:$0xf]
      %v637 = vld [vmem:[%s2] sm:$0x1]
      %v639 = vperm.slane %v637, 0
      %v739 = vunpack.c.l.b16 %v539
      %v740 = vunpack.c.l.b16 %v540
      %v741 = vunpack.c.l.b16 %v541
      %v742 = vunpack.c.l.b16 %v542
      %v743 = vunpack.c.l.b16 %v543
      %v744 = vunpack.c.l.b16 %v544
      %v745 = vunpack.c.l.b16 %v545
      %v746 = vunpack.c.l.b16 %v546
      %v747 = vunpack.c.l.b16 %v547
      %v748 = vunpack.c.l.b16 %v548
      %v749 = vunpack.c.l.b16 %v549
      %v750 = vunpack.c.l.b16 %v550
      %v751 = vunpack.c.l.b16 %v551
      %v752 = vunpack.c.l.b16 %v552
      %v753 = vunpack.c.l.b16 %v553
      %v754 = vunpack.c.l.b16 %v554
      %v755 = vunpack.c.l.b16 %v555
      %v756 = vunpack.c.l.b16 %v556
      %v757 = vunpack.c.l.b16 %v557
      %v758 = vunpack.c.l.b16 %v558
      %v759 = vunpack.c.l.b16 %v559
      %v760 = vunpack.c.l.b16 %v560
      %v761 = vunpack.c.l.b16 %v561
      %v762 = vunpack.c.l.b16 %v562
      %v763 = vunpack.c.l.b16 %v563
      %v764 = vunpack.c.l.b16 %v564
      %v765 = vunpack.c.l.b16 %v565
      %v766 = vunpack.c.l.b16 %v566
      %v767 = vunpack.c.l.b16 %v567
      %v768 = vunpack.c.l.b16 %v568
      %v769 = vunpack.c.l.b16 %v569
      %v770 = vunpack.c.l.b16 %v570
      %v771 = vunpack.c.l.b16 %v571
      %v772 = vunpack.c.l.b16 %v572
      %v773 = vunpack.c.l.b16 %v573
      %v774 = vunpack.c.l.b16 %v574
      %v775 = vunpack.c.l.b16 %v575
      %v776 = vunpack.c.l.b16 %v576
      %v777 = vunpack.c.l.b16 %v577
      %v778 = vunpack.c.l.b16 %v578
      %v779 = vunpack.c.l.b16 %v579
      %v780 = vunpack.c.l.b16 %v580
      %v781 = vunpack.c.l.b16 %v581
      %v782 = vunpack.c.l.b16 %v582
      %v783 = vunpack.c.l.b16 %v583
      %v784 = vunpack.c.l.b16 %v584
      %v785 = vunpack.c.l.b16 %v585
      %v786 = vunpack.c.l.b16 %v586
      %v787 = vunpack.c.l.b16 %v587
      %v788 = vunpack.c.l.b16 %v588
      %v789 = vunpack.c.l.b16 %v589
      %v790 = vunpack.c.l.b16 %v590
      %v791 = vunpack.c.l.b16 %v591
      %v792 = vunpack.c.l.b16 %v592
      %v793 = vunpack.c.l.b16 %v593
      %v794 = vunpack.c.l.b16 %v594
      %v795 = vunpack.c.l.b16 %v595
      %v796 = vunpack.c.l.b16 %v596
      %v797 = vunpack.c.l.b16 %v597
      %v798 = vunpack.c.l.b16 %v598
      %v799 = vunpack.c.l.b16 %v599
      %v800 = vunpack.c.l.b16 %v600
      %v801 = vunpack.c.l.b16 %v601
      %v802 = vunpack.c.l.b16 %v602
      %v803 = vunpack.c.l.b16 %v603
      %v804 = vunpack.c.l.b16 %v604
      %v805 = vunpack.c.l.b16 %v605
      %v806 = vunpack.c.l.b16 %v606
      %v807 = vunpack.c.l.b16 %v607
      %v808 = vunpack.c.l.b16 %v608
      %v809 = vunpack.c.l.b16 %v609
      %v810 = vunpack.c.l.b16 %v610
      %v811 = vunpack.c.l.b16 %v611
      %v812 = vunpack.c.l.b16 %v612
      %v813 = vunpack.c.l.b16 %v613
      %v814 = vunpack.c.l.b16 %v614
      %v815 = vunpack.c.l.b16 %v615
      %v816 = vunpack.c.l.b16 %v616
      %v817 = vunpack.c.l.b16 %v617
      %v818 = vunpack.c.l.b16 %v618
      %v819 = vunpack.c.l.b16 %v619
      %v820 = vunpack.c.l.b16 %v620
      %v821 = vunpack.c.l.b16 %v621
      %v822 = vunpack.c.l.b16 %v622
      %v823 = vunpack.c.l.b16 %v623
      %v824 = vunpack.c.l.b16 %v624
      %v825 = vunpack.c.l.b16 %v625
      %v826 = vunpack.c.l.b16 %v626
      %v827 = vunpack.c.l.b16 %v627
      %v828 = vunpack.c.l.b16 %v628
      %v829 = vunpack.c.l.b16 %v629
      %v830 = vunpack.c.l.b16 %v630
      %v831 = vunpack.c.l.b16 %v631
      %v832 = vunpack.c.l.b16 %v632
      %v833 = vunpack.c.l.b16 %v633
      %v834 = vunpack.c.l.b16 %v634
      %v835 = vunpack.c.l.b16 %v635
      %v836 = vunpack.c.l.b16 %v636
      %v837 = vpack.c.b16 %v740, %v739
      %v838 = vpack.c.b16 %v742, %v741
      %v839 = vpack.c.b16 %v744, %v743
      %v840 = vpack.c.b16 %v746, %v745
      %v841 = vpack.c.b16 %v748, %v747
      %v842 = vpack.c.b16 %v750, %v749
      %v843 = vpack.c.b16 %v752, %v751
      %v844 = vpack.c.b16 %v754, %v753
      %v845 = vpack.c.b16 %v756, %v755
      %v846 = vpack.c.b16 %v758, %v757
      %v847 = vpack.c.b16 %v760, %v759
      %v848 = vpack.c.b16 %v762, %v761
      %v849 = vpack.c.b16 %v764, %v763
      %v850 = vpack.c.b16 %v766, %v765
      %v851 = vpack.c.b16 %v768, %v767
      %v852 = vpack.c.b16 %v770, %v769
      %v853 = vpack.c.b16 %v772, %v771
      %v854 = vpack.c.b16 %v774, %v773
      %v855 = vpack.c.b16 %v776, %v775
      %v856 = vpack.c.b16 %v778, %v777
      %v857 = vpack.c.b16 %v780, %v779
      %v858 = vpack.c.b16 %v782, %v781
      %v859 = vpack.c.b16 %v784, %v783
      %v860 = vpack.c.b16 %v786, %v785
      %v861 = vpack.c.b16 %v788, %v787
      %v862 = vpack.c.b16 %v790, %v789
      %v863 = vpack.c.b16 %v792, %v791
      %v864 = vpack.c.b16 %v794, %v793
      %v865 = vpack.c.b16 %v796, %v795
      %v866 = vpack.c.b16 %v798, %v797
      %v867 = vpack.c.b16 %v800, %v799
      %v868 = vpack.c.b16 %v802, %v801
      %v869 = vpack.c.b16 %v804, %v803
      %v870 = vpack.c.b16 %v806, %v805
      %v871 = vpack.c.b16 %v808, %v807
      %v872 = vpack.c.b16 %v810, %v809
      %v873 = vpack.c.b16 %v812, %v811
      %v874 = vpack.c.b16 %v814, %v813
      %v875 = vpack.c.b16 %v816, %v815
      %v876 = vpack.c.b16 %v818, %v817
      %v877 = vpack.c.b16 %v820, %v819
      %v878 = vpack.c.b16 %v822, %v821
      %v879 = vpack.c.b16 %v824, %v823
      %v880 = vpack.c.b16 %v826, %v825
      %v881 = vpack.c.b16 %v828, %v827
      %v882 = vpack.c.b16 %v830, %v829
      %v883 = vpack.c.b16 %v832, %v831
      %v884 = vpack.c.b16 %v834, %v833
      %v885 = vpack.c.b16 %v836, %v835
      %vm935 = vcmask 130048
      %v937 = vsel %vm935, %v531, 0
      %v940 = vsel %vm935, %v538, 0
      %942 = vmatpush.bf16.msra.mxu0 %v844
      %943 = vmatpush.bf16.msra.mxu0 %v843
      %944 = vmatpush.bf16.msra.mxu0 %v842
      %945 = vmatpush.bf16.msra.mxu0 %v841
      %946 = vmatpush.bf16.msra.mxu0 %v840
      %947 = vmatpush.bf16.msra.mxu0 %v839
      %948 = vmatpush.bf16.msra.mxu0 %v838
      %949 = vmatpush.bf16.msra.mxu0 %v837
      %950 = vmatmul.bf16.gmra.mxu0 %v525
      %v951 = vpop.f32.mrf.mxu0
      %v952 = vadd.f32 %v639, %v951
      %v953 = vpop.f32.mrf.mxu0
      %v954 = vadd.f32 %v639, %v953
      %955 = vmatmul.bf16.gmra.mxu0 %v532
      %v956 = vpop.f32.mrf.mxu0
      %v957 = vadd.f32 %v639, %v956
      %v958 = vpop.f32.mrf.mxu0
      %959 = vdwg.mxu0
      %960 = vmatpush.bf16.msra.mxu0 %v852
      %961 = vmatpush.bf16.msra.mxu0 %v851
      %962 = vmatpush.bf16.msra.mxu0 %v850
      %963 = vmatpush.bf16.msra.mxu0 %v849
      %964 = vmatpush.bf16.msra.mxu0 %v848
      %965 = vmatpush.bf16.msra.mxu0 %v847
      %966 = vmatpush.bf16.msra.mxu0 %v846
      %967 = vmatpush.bf16.msra.mxu0 %v845
      %968 = vmatmul.bf16.gmra.mxu0 %v526
      %v969 = vpop.f32.mrf.mxu0
      %v970 = vadd.f32 %v952, %v969
      %v971 = vpop.f32.mrf.mxu0
      %v972 = vadd.f32 %v954, %v971
      %973 = vmatmul.bf16.gmra.mxu0 %v533
      %v974 = vpop.f32.mrf.mxu0
      %v975 = vadd.f32 %v957, %v974
      %v976 = vpop.f32.mrf.mxu0
      %977 = vdwg.mxu0
      %978 = vmatpush.bf16.msra.mxu0 %v860
      %979 = vmatpush.bf16.msra.mxu0 %v859
      %980 = vmatpush.bf16.msra.mxu0 %v858
      %981 = vmatpush.bf16.msra.mxu0 %v857
      %982 = vmatpush.bf16.msra.mxu0 %v856
      %983 = vmatpush.bf16.msra.mxu0 %v855
      %984 = vmatpush.bf16.msra.mxu0 %v854
      %985 = vmatpush.bf16.msra.mxu0 %v853
      %986 = vmatmul.bf16.gmra.mxu0 %v527
      %v987 = vpop.f32.mrf.mxu0
      %v988 = vadd.f32 %v970, %v987
      %v989 = vpop.f32.mrf.mxu0
      %v990 = vadd.f32 %v972, %v989
      %991 = vmatmul.bf16.gmra.mxu0 %v534
      %v992 = vpop.f32.mrf.mxu0
      %v993 = vadd.f32 %v975, %v992
      %v994 = vpop.f32.mrf.mxu0
      %995 = vdwg.mxu0
      %996 = vmatpush.bf16.msra.mxu0 %v868
      %997 = vmatpush.bf16.msra.mxu0 %v867
      %998 = vmatpush.bf16.msra.mxu0 %v866
      %999 = vmatpush.bf16.msra.mxu0 %v865
      %1000 = vmatpush.bf16.msra.mxu0 %v864
      %1001 = vmatpush.bf16.msra.mxu0 %v863
      %1002 = vmatpush.bf16.msra.mxu0 %v862
      %1003 = vmatpush.bf16.msra.mxu0 %v861
      %1004 = vmatmul.bf16.gmra.mxu0 %v528
      %v1005 = vpop.f32.mrf.mxu0
      %v1006 = vadd.f32 %v988, %v1005
      %v1007 = vpop.f32.mrf.mxu0
      %v1008 = vadd.f32 %v990, %v1007
      %1009 = vmatmul.bf16.gmra.mxu0 %v535
      %v1010 = vpop.f32.mrf.mxu0
      %v1011 = vadd.f32 %v993, %v1010
      %v1012 = vpop.f32.mrf.mxu0
      %1013 = vdwg.mxu0
      %1014 = vmatpush.bf16.msra.mxu0 %v876
      %1015 = vmatpush.bf16.msra.mxu0 %v875
      %1016 = vmatpush.bf16.msra.mxu0 %v874
      %1017 = vmatpush.bf16.msra.mxu0 %v873
      %1018 = vmatpush.bf16.msra.mxu0 %v872
      %1019 = vmatpush.bf16.msra.mxu0 %v871
      %1020 = vmatpush.bf16.msra.mxu0 %v870
      %1021 = vmatpush.bf16.msra.mxu0 %v869
      %1022 = vmatmul.bf16.gmra.mxu0 %v529
      %v1023 = vpop.f32.mrf.mxu0
      %v1024 = vadd.f32 %v1006, %v1023
      %v1025 = vpop.f32.mrf.mxu0
      %v1026 = vadd.f32 %v1008, %v1025
      %1027 = vmatmul.bf16.gmra.mxu0 %v536
      %v1028 = vpop.f32.mrf.mxu0
      %v1029 = vadd.f32 %v1011, %v1028
      %v1030 = vpop.f32.mrf.mxu0
      %1031 = vdwg.mxu0
      %1032 = vmatpush.bf16.msra.mxu0 %v884
      %1033 = vmatpush.bf16.msra.mxu0 %v883
      %1034 = vmatpush.bf16.msra.mxu0 %v882
      %1035 = vmatpush.bf16.msra.mxu0 %v881
      %1036 = vmatpush.bf16.msra.mxu0 %v880
      %1037 = vmatpush.bf16.msra.mxu0 %v879
      %1038 = vmatpush.bf16.msra.mxu0 %v878
      %1039 = vmatpush.bf16.msra.mxu0 %v877
      %1040 = vmatmul.bf16.gmra.mxu0 %v530
      %v1041 = vpop.f32.mrf.mxu0
      %v1042 = vadd.f32 %v1024, %v1041
      %v1043 = vpop.f32.mrf.mxu0
      %v1044 = vadd.f32 %v1026, %v1043
      %1045 = vmatmul.bf16.gmra.mxu0 %v537
      %v1046 = vpop.f32.mrf.mxu0
      %v1047 = vadd.f32 %v1029, %v1046
      %v1048 = vpop.f32.mrf.mxu0
      %1049 = vdwg.mxu0
      %1050 = vmatpush.bf16.msra.mxu0 0
      %1051 = vmatpush.bf16.msra.mxu0 0
      %1052 = vmatpush.bf16.msra.mxu0 0
      %1053 = vmatpush.bf16.msra.mxu0 0
      %1054 = vmatpush.bf16.msra.mxu0 0
      %1055 = vmatpush.bf16.msra.mxu0 0
      %1056 = vmatpush.bf16.msra.mxu0 0
      %1057 = vmatpush.bf16.msra.mxu0 %v885
      %1058 = vmatmul.bf16.gmra.mxu0 %v937
      %v1059 = vpop.f32.mrf.mxu0
      %v1060 = vadd.f32 %v1042, %v1059
      %v1061 = vpop.f32.mrf.mxu0
      %v1062 = vadd.f32 %v1044, %v1061
      %1063 = vmatmul.bf16.gmra.mxu0 %v940
      %v1064 = vpop.f32.mrf.mxu0
      %v1065 = vadd.f32 %v1047, %v1064
      %v1066 = vpop.f32.mrf.mxu0
      %1067 = vdwg.mxu0
      %v1068 = vmax.f32 %v1060, 0.0
      %v1069 = vmax.f32 %v1062, 0.0
      %v1070 = vmax.f32 %v1065, 0.0
      %v1071 = vpack.c.bf16 %v1069, %v1068
      %v1072 = vpack.c.bf16 %v1070, %v1070
      %v1073 = vld [vmem:[%s3] sm:$0xf]
      %v1074 = vld [vmem:[%s3 + $0x4] sm:$0xf]
      %v1075 = vld [vmem:[%s3 + $0x8] sm:$0xf]
      %v1076 = vld [vmem:[%s3 + $0xc] sm:$0xf]
      %v1077 = vld [vmem:[%s3 + $0x10] sm:$0xf]
      %v1078 = vld [vmem:[%s3 + $0x14] sm:$0xf]
      %v1079 = vld [vmem:[%s3 + $0x18] sm:$0xf]
      %v1080 = vld [vmem:[%s3 + $0x1c] sm:$0xf]
      %v1081 = vld [vmem:[%s3 + $0x20] sm:$0xf]
      %v1082 = vld [vmem:[%s3 + $0x24] sm:$0xf]
      %v1083 = vld [vmem:[%s3 + $0x28] sm:$0xf]
      %v1084 = vld [vmem:[%s3 + $0x2c] sm:$0xf]
      %v1085 = vld [vmem:[%s3 + $0x30] sm:$0xf]
      %v1086 = vld [vmem:[%s3 + $0x34] sm:$0xf]
      %v1087 = vld [vmem:[%s3 + $0x38] sm:$0xf]
      %v1088 = vld [vmem:[%s3 + $0x3c] sm:$0xf]
      %v1089 = vld [vmem:[%s4] sm:$0x1]
      %v1091 = vperm.slane %v1089, 0
      %v1109 = vunpack.c.l.b16 %v1073
      %v1110 = vunpack.c.l.b16 %v1074
      %v1111 = vunpack.c.l.b16 %v1075
      %v1112 = vunpack.c.l.b16 %v1076
      %v1113 = vunpack.c.l.b16 %v1077
      %v1114 = vunpack.c.l.b16 %v1078
      %v1115 = vunpack.c.l.b16 %v1079
      %v1116 = vunpack.c.l.b16 %v1080
      %v1117 = vunpack.c.l.b16 %v1081
      %v1118 = vunpack.c.l.b16 %v1082
      %v1119 = vunpack.c.l.b16 %v1083
      %v1120 = vunpack.c.l.b16 %v1084
      %v1121 = vunpack.c.l.b16 %v1085
      %v1122 = vunpack.c.l.b16 %v1086
      %v1123 = vunpack.c.l.b16 %v1087
      %v1124 = vunpack.c.l.b16 %v1088
      %v1125 = vpack.c.b16 %v1110, %v1109
      %v1126 = vpack.c.b16 %v1112, %v1111
      %v1127 = vpack.c.b16 %v1114, %v1113
      %v1128 = vpack.c.b16 %v1116, %v1115
      %v1129 = vpack.c.b16 %v1118, %v1117
      %v1130 = vpack.c.b16 %v1120, %v1119
      %v1131 = vpack.c.b16 %v1122, %v1121
      %v1132 = vpack.c.b16 %v1124, %v1123
      %1141 = vmatpush.bf16.msra.mxu0 %v1132
      %1142 = vmatpush.bf16.msra.mxu0 %v1131
      %1143 = vmatpush.bf16.msra.mxu0 %v1130
      %1144 = vmatpush.bf16.msra.mxu0 %v1129
      %1145 = vmatpush.bf16.msra.mxu0 %v1128
      %1146 = vmatpush.bf16.msra.mxu0 %v1127
      %1147 = vmatpush.bf16.msra.mxu0 %v1126
      %1148 = vmatpush.bf16.msra.mxu0 %v1125
      %1149 = vmatmul.bf16.gmra.mxu0 %v1071
      %v1150 = vpop.f32.mrf.mxu0
      %v1151 = vadd.f32 %v1091, %v1150
      %v1152 = vpop.f32.mrf.mxu0
      %v1153 = vadd.f32 %v1091, %v1152
      %1154 = vmatmul.bf16.gmra.mxu0 %v1072
      %v1155 = vpop.f32.mrf.mxu0
      %v1156 = vadd.f32 %v1091, %v1155
      %v1157 = vpop.f32.mrf.mxu0
      %1158 = vdwg.mxu0
      %v1159 = vmax.f32 %v1151, 0.0
      %v1160 = vmax.f32 %v1153, 0.0
      %v1161 = vmax.f32 %v1156, 0.0
      %v1162 = vpack.c.bf16 %v1160, %v1159
      %v1163 = vpack.c.bf16 %v1161, %v1161
      %v1164 = vld [vmem:[%s5] sm:$0xf]
      %v1165 = vld [vmem:[%s5 + $0x4] sm:$0xf]
      %v1166 = vld [vmem:[%s5 + $0x8] sm:$0xf]
      %v1167 = vld [vmem:[%s5 + $0xc] sm:$0xf]
      %v1168 = vld [vmem:[%s5 + $0x10] sm:$0xf]
      %v1169 = vld [vmem:[%s5 + $0x14] sm:$0xf]
      %v1170 = vld [vmem:[%s5 + $0x18] sm:$0xf]
      %v1171 = vld [vmem:[%s5 + $0x1c] sm:$0xf]
      %v1172 = vld [vmem:[%s6] sm:$0x1]
      %v1174 = vperm.slane %v1172, 0
      %v1184 = vunpack.c.l.b16 %v1164
      %v1185 = vunpack.c.l.b16 %v1165
      %v1186 = vunpack.c.l.b16 %v1166
      %v1187 = vunpack.c.l.b16 %v1167
      %v1188 = vunpack.c.l.b16 %v1168
      %v1189 = vunpack.c.l.b16 %v1169
      %v1190 = vunpack.c.l.b16 %v1170
      %v1191 = vunpack.c.l.b16 %v1171
      %v1192 = vpack.c.b16 %v1185, %v1184
      %v1193 = vpack.c.b16 %v1187, %v1186
      %v1194 = vpack.c.b16 %v1189, %v1188
      %v1195 = vpack.c.b16 %v1191, %v1190
      %vm1200 = vcmask 523264
      %v1202 = vsel %vm1200, %v1162, 0
      %v1205 = vsel %vm1200, %v1163, 0
      %1207 = vmatpush.bf16.msra.mxu0 0
      %1208 = vmatpush.bf16.msra.mxu0 0
      %1209 = vmatpush.bf16.msra.mxu0 0
      %1210 = vmatpush.bf16.msra.mxu0 0
      %1211 = vmatpush.bf16.msra.mxu0 %v1195
      %1212 = vmatpush.bf16.msra.mxu0 %v1194
      %1213 = vmatpush.bf16.msra.mxu0 %v1193
      %1214 = vmatpush.bf16.msra.mxu0 %v1192
      %1215 = vmatmul.bf16.gmra.mxu0 %v1202
      %v1216 = vpop.f32.mrf.mxu0
      %v1217 = vadd.f32 %v1174, %v1216
      %v1218 = vpop.f32.mrf.mxu0
      %v1219 = vadd.f32 %v1174, %v1218
      %1220 = vmatmul.bf16.gmra.mxu0 %v1205
      %v1221 = vpop.f32.mrf.mxu0
      %v1222 = vadd.f32 %v1174, %v1221
      %v1223 = vpop.f32.mrf.mxu0
      %1224 = vdwg.mxu0
      %v1225 = vmax.f32 %v1217, 0.0
      %v1226 = vmax.f32 %v1219, 0.0
      %v1227 = vmax.f32 %v1222, 0.0
      %v1228 = vpack.c.bf16 %v1226, %v1225
      %v1229 = vpack.c.bf16 %v1227, %v1227
      %v1230 = vld [vmem:[%s7] sm:$0xf]
      %v1231 = vld [vmem:[%s7 + $0x4] sm:$0x3]
      %v1232 = vld [vmem:[%s8] sm:$0x1]
      %v1234 = vperm.slane %v1232, 0
      %v1238 = vunpack.c.l.b16 %v1230
      %v1239 = vunpack.c.l.b16 %v1231
      %v1240 = vpack.c.b16 %v1239, %v1238
      %vm1241 = vcmask 97280
      %v1243 = vsel %vm1241, %v1228, 0
      %v1246 = vsel %vm1241, %v1229, 0
      %vm1248 = vcmask 1045504
      %v1250 = vsel %vm1248, %v1240, 0
      %1252 = vmatpush.bf16.msra.mxu0 0
      %1253 = vmatpush.bf16.msra.mxu0 0
      %1254 = vmatpush.bf16.msra.mxu0 0
      %1255 = vmatpush.bf16.msra.mxu0 0
      %1256 = vmatpush.bf16.msra.mxu0 0
      %1257 = vmatpush.bf16.msra.mxu0 0
      %1258 = vmatpush.bf16.msra.mxu0 0
      %1259 = vmatpush.bf16.msra.mxu0 %v1250
      %1260 = vmatmul.bf16.gmra.mxu0 %v1243
      %v1261 = vpop.f32.mrf.mxu0
      %v1262 = vadd.f32 %v1234, %v1261
      %v1263 = vpop.f32.mrf.mxu0
      %v1264 = vadd.f32 %v1234, %v1263
      %1265 = vmatmul.bf16.gmra.mxu0 %v1246
      %v1266 = vpop.f32.mrf.mxu0
      %v1267 = vadd.f32 %v1234, %v1266
      %v1268 = vpop.f32.mrf.mxu0
      %1269 = vdwg.mxu0
      %v1270 = vmax.f32 %v1262, 0.0
      %v1271 = vmax.f32 %v1264, 0.0
      %v1272 = vmax.f32 %v1267, 0.0
      %v1273 = vpack.c.bf16 %v1271, %v1270
      %v1274 = vpack.c.bf16 %v1272, %v1272
      %v1275 = vld [vmem:[%s9] sm:$0xf]
      %v1276 = vld [vmem:[%s9 + $0x4] sm:$0x3]
      %v1277 = vld [vmem:[%s10] sm:$0x1]
      %v1279 = vperm.slane %v1277, 0
      %v1283 = vunpack.c.l.b16 %v1275
      %v1284 = vunpack.c.l.b16 %v1276
      %v1285 = vpack.c.b16 %v1284, %v1283
      %v1287 = vsel %vm1241, %v1273, 0
      %v1290 = vsel %vm1241, %v1274, 0
      %v1293 = vsel %vm1248, %v1285, 0
      %1295 = vmatpush.bf16.msra.mxu0 0
      %1296 = vmatpush.bf16.msra.mxu0 0
      %1297 = vmatpush.bf16.msra.mxu0 0
      %1298 = vmatpush.bf16.msra.mxu0 0
      %1299 = vmatpush.bf16.msra.mxu0 0
      %1300 = vmatpush.bf16.msra.mxu0 0
      %1301 = vmatpush.bf16.msra.mxu0 0
      %1302 = vmatpush.bf16.msra.mxu0 %v1293
      %1303 = vmatmul.bf16.gmra.mxu0 %v1287
      %v1304 = vpop.f32.mrf.mxu0
      %v1305 = vadd.f32 %v1279, %v1304
      %v1306 = vpop.f32.mrf.mxu0
      %v1307 = vadd.f32 %v1279, %v1306
      %1308 = vmatmul.bf16.gmra.mxu0 %v1290
      %v1309 = vpop.f32.mrf.mxu0
      %v1310 = vadd.f32 %v1279, %v1309
      %v1311 = vpop.f32.mrf.mxu0
      %1312 = vdwg.mxu0
      %v1313 = vmax.f32 %v1305, 0.0
      %v1314 = vmax.f32 %v1307, 0.0
      %v1315 = vmax.f32 %v1310, 0.0
      %v1316 = vpack.c.bf16 %v1314, %v1313
      %v1317 = vpack.c.bf16 %v1315, %v1315
      %v1318 = vld [vmem:[%s11] sm:$0xf]
      %v1319 = vld [vmem:[%s11 + $0x4] sm:$0xf]
      %v1320 = vld [vmem:[%s11 + $0x8] sm:$0xf]
      %v1321 = vld [vmem:[%s11 + $0xc] sm:$0xf]
      %v1322 = vld [vmem:[%s11 + $0x10] sm:$0xf]
      %v1323 = vld [vmem:[%s11 + $0x14] sm:$0xf]
      %v1324 = vld [vmem:[%s11 + $0x18] sm:$0xf]
      %v1325 = vld [vmem:[%s11 + $0x1c] sm:$0xf]
      %v1326 = vld [vmem:[%s12] sm:$0x1]
      %v1328 = vperm.slane %v1326, 0
      %v1338 = vunpack.c.l.b16 %v1318
      %v1339 = vunpack.c.l.b16 %v1319
      %v1340 = vunpack.c.l.b16 %v1320
      %v1341 = vunpack.c.l.b16 %v1321
      %v1342 = vunpack.c.l.b16 %v1322
      %v1343 = vunpack.c.l.b16 %v1323
      %v1344 = vunpack.c.l.b16 %v1324
      %v1345 = vunpack.c.l.b16 %v1325
      %v1346 = vpack.c.b16 %v1339, %v1338
      %v1347 = vpack.c.b16 %v1341, %v1340
      %v1348 = vpack.c.b16 %v1343, %v1342
      %v1349 = vpack.c.b16 %v1345, %v1344
      %v1355 = vsel %vm1200, %v1316, 0
      %v1358 = vsel %vm1200, %v1317, 0
      %1360 = vmatpush.bf16.msra.mxu0 0
      %1361 = vmatpush.bf16.msra.mxu0 0
      %1362 = vmatpush.bf16.msra.mxu0 0
      %1363 = vmatpush.bf16.msra.mxu0 0
      %1364 = vmatpush.bf16.msra.mxu0 %v1349
      %1365 = vmatpush.bf16.msra.mxu0 %v1348
      %1366 = vmatpush.bf16.msra.mxu0 %v1347
      %1367 = vmatpush.bf16.msra.mxu0 %v1346
      %1368 = vmatmul.bf16.gmra.mxu0 %v1355
      %v1369 = vpop.f32.mrf.mxu0
      %v1370 = vadd.f32 %v1328, %v1369
      %v1371 = vpop.f32.mrf.mxu0
      %v1372 = vadd.f32 %v1328, %v1371
      %1373 = vmatmul.bf16.gmra.mxu0 %v1358
      %v1374 = vpop.f32.mrf.mxu0
      %v1375 = vadd.f32 %v1328, %v1374
      %v1376 = vpop.f32.mrf.mxu0
      %1377 = vdwg.mxu0
      %v1378 = vmax.f32 %v1370, 0.0
      %v1379 = vmax.f32 %v1372, 0.0
      %v1380 = vmax.f32 %v1375, 0.0
      %v1381 = vpack.c.bf16 %v1379, %v1378
      %v1382 = vpack.c.bf16 %v1380, %v1380
      %v1383 = vld [vmem:[%s13] sm:$0xff]
      %v1384 = vld [vmem:[%s13 + $0x8] sm:$0xff]
      %v1385 = vld [vmem:[%s13 + $0x10] sm:$0xff]
      %v1386 = vld [vmem:[%s13 + $0x18] sm:$0xf]
      %v1387 = vld [vmem:[%s13 + $0x1c] sm:$0xff]
      %v1388 = vld [vmem:[%s13 + $0x24] sm:$0xff]
      %v1389 = vld [vmem:[%s13 + $0x2c] sm:$0xff]
      %v1390 = vld [vmem:[%s13 + $0x34] sm:$0xf]
      %v1391 = vld [vmem:[%s13 + $0x38] sm:$0xff]
      %v1392 = vld [vmem:[%s13 + $0x40] sm:$0xff]
      %v1393 = vld [vmem:[%s13 + $0x48] sm:$0xff]
      %v1394 = vld [vmem:[%s13 + $0x50] sm:$0xf]
      %v1395 = vld [vmem:[%s13 + $0x54] sm:$0xff]
      %v1396 = vld [vmem:[%s13 + $0x5c] sm:$0xff]
      %v1397 = vld [vmem:[%s13 + $0x64] sm:$0xff]
      %v1398 = vld [vmem:[%s13 + $0x6c] sm:$0xf]
      %v1399 = vld [vmem:[%s13 + $0x70] sm:$0xff]
      %v1400 = vld [vmem:[%s13 + $0x78] sm:$0xff]
      %v1401 = vld [vmem:[%s13 + $0x80] sm:$0xff]
      %v1402 = vld [vmem:[%s13 + $0x88] sm:$0xf]
      %v1403 = vld [vmem:[%s13 + $0x8c] sm:$0xff]
      %v1404 = vld [vmem:[%s13 + $0x94] sm:$0xff]
      %v1405 = vld [vmem:[%s13 + $0x9c] sm:$0xff]
      %v1406 = vld [vmem:[%s13 + $0xa4] sm:$0xf]
      %v1407 = vld [vmem:[%s13 + $0xa8] sm:$0xff]
      %v1408 = vld [vmem:[%s13 + $0xb0] sm:$0xff]
      %v1409 = vld [vmem:[%s13 + $0xb8] sm:$0xff]
      %v1410 = vld [vmem:[%s13 + $0xc0] sm:$0xf]
      %v1411 = vld [vmem:[%s13 + $0xc4] sm:$0xff]
      %v1412 = vld [vmem:[%s13 + $0xcc] sm:$0xff]
      %v1413 = vld [vmem:[%s13 + $0xd4] sm:$0xff]
      %v1414 = vld [vmem:[%s13 + $0xdc] sm:$0xf]
      %v1415 = vld [vmem:[%s13 + $0xe0] sm:$0xff]
      %v1416 = vld [vmem:[%s13 + $0xe8] sm:$0xff]
      %v1417 = vld [vmem:[%s13 + $0xf0] sm:$0xff]
      %v1418 = vld [vmem:[%s13 + $0xf8] sm:$0xf]
      %v1419 = vld [vmem:[%s13 + $0xfc] sm:$0xff]
      %v1420 = vld [vmem:[%s13 + $0x104] sm:$0xff]
      %v1421 = vld [vmem:[%s13 + $0x10c] sm:$0xff]
      %v1422 = vld [vmem:[%s13 + $0x114] sm:$0xf]
      %v1423 = vld [vmem:[%s13 + $0x118] sm:$0xff]
      %v1424 = vld [vmem:[%s13 + $0x120] sm:$0xff]
      %v1425 = vld [vmem:[%s13 + $0x128] sm:$0xff]
      %v1426 = vld [vmem:[%s13 + $0x130] sm:$0xf]
      %v1427 = vld [vmem:[%s13 + $0x134] sm:$0xff]
      %v1428 = vld [vmem:[%s13 + $0x13c] sm:$0xff]
      %v1429 = vld [vmem:[%s13 + $0x144] sm:$0xff]
      %v1430 = vld [vmem:[%s13 + $0x14c] sm:$0xf]
      %v1431 = vld [vmem:[%s13 + $0x150] sm:$0xff]
      %v1432 = vld [vmem:[%s13 + $0x158] sm:$0xff]
      %v1433 = vld [vmem:[%s13 + $0x160] sm:$0xff]
      %v1434 = vld [vmem:[%s13 + $0x168] sm:$0xf]
      %v1435 = vld [vmem:[%s13 + $0x16c] sm:$0xff]
      %v1436 = vld [vmem:[%s13 + $0x174] sm:$0xff]
      %v1437 = vld [vmem:[%s13 + $0x17c] sm:$0xff]
      %v1438 = vld [vmem:[%s13 + $0x184] sm:$0xf]
      %v1439 = vld [vmem:[%s13 + $0x188] sm:$0xff]
      %v1440 = vld [vmem:[%s13 + $0x190] sm:$0xff]
      %v1441 = vld [vmem:[%s13 + $0x198] sm:$0xff]
      %v1442 = vld [vmem:[%s13 + $0x1a0] sm:$0xf]
      %v1443 = vld [vmem:[%s13 + $0x1a4] sm:$0xff]
      %v1444 = vld [vmem:[%s13 + $0x1ac] sm:$0xff]
      %v1445 = vld [vmem:[%s13 + $0x1b4] sm:$0xff]
      %v1446 = vld [vmem:[%s13 + $0x1bc] sm:$0xf]
      %v1447 = vld [vmem:[%s14] sm:$0x7f]
      %v1449 = vperm.slane %v1447, 0
      %v1450 = vperm.slane %v1447, 1
      %v1451 = vperm.slane %v1447, 2
      %v1452 = vperm.slane %v1447, 3
      %v1453 = vperm.slane %v1447, 4
      %v1454 = vperm.slane %v1447, 5
      %v1455 = vperm.slane %v1447, 6
      %v1527 = vunpack.c.l.b16 %v1383
      %v1528 = vunpack.c.h.b16 %v1383
      %v1529 = vunpack.c.l.b16 %v1384
      %v1530 = vunpack.c.h.b16 %v1384
      %v1531 = vunpack.c.l.b16 %v1385
      %v1532 = vunpack.c.h.b16 %v1385
      %v1533 = vunpack.c.l.b16 %v1386
      %v1534 = vunpack.c.l.b16 %v1387
      %v1535 = vunpack.c.h.b16 %v1387
      %v1536 = vunpack.c.l.b16 %v1388
      %v1537 = vunpack.c.h.b16 %v1388
      %v1538 = vunpack.c.l.b16 %v1389
      %v1539 = vunpack.c.h.b16 %v1389
      %v1540 = vunpack.c.l.b16 %v1390
      %v1541 = vunpack.c.l.b16 %v1391
      %v1542 = vunpack.c.h.b16 %v1391
      %v1543 = vunpack.c.l.b16 %v1392
      %v1544 = vunpack.c.h.b16 %v1392
      %v1545 = vunpack.c.l.b16 %v1393
      %v1546 = vunpack.c.h.b16 %v1393
      %v1547 = vunpack.c.l.b16 %v1394
      %v1548 = vunpack.c.l.b16 %v1395
      %v1549 = vunpack.c.h.b16 %v1395
      %v1550 = vunpack.c.l.b16 %v1396
      %v1551 = vunpack.c.h.b16 %v1396
      %v1552 = vunpack.c.l.b16 %v1397
      %v1553 = vunpack.c.h.b16 %v1397
      %v1554 = vunpack.c.l.b16 %v1398
      %v1555 = vunpack.c.l.b16 %v1399
      %v1556 = vunpack.c.h.b16 %v1399
      %v1557 = vunpack.c.l.b16 %v1400
      %v1558 = vunpack.c.h.b16 %v1400
      %v1559 = vunpack.c.l.b16 %v1401
      %v1560 = vunpack.c.h.b16 %v1401
      %v1561 = vunpack.c.l.b16 %v1402
      %v1562 = vunpack.c.l.b16 %v1403
      %v1563 = vunpack.c.h.b16 %v1403
      %v1564 = vunpack.c.l.b16 %v1404
      %v1565 = vunpack.c.h.b16 %v1404
      %v1566 = vunpack.c.l.b16 %v1405
      %v1567 = vunpack.c.h.b16 %v1405
      %v1568 = vunpack.c.l.b16 %v1406
      %v1569 = vunpack.c.l.b16 %v1407
      %v1570 = vunpack.c.h.b16 %v1407
      %v1571 = vunpack.c.l.b16 %v1408
      %v1572 = vunpack.c.h.b16 %v1408
      %v1573 = vunpack.c.l.b16 %v1409
      %v1574 = vunpack.c.h.b16 %v1409
      %v1575 = vunpack.c.l.b16 %v1410
      %v1576 = vunpack.c.l.b16 %v1411
      %v1577 = vunpack.c.h.b16 %v1411
      %v1578 = vunpack.c.l.b16 %v1412
      %v1579 = vunpack.c.h.b16 %v1412
      %v1580 = vunpack.c.l.b16 %v1413
      %v1581 = vunpack.c.h.b16 %v1413
      %v1582 = vunpack.c.l.b16 %v1414
      %v1583 = vunpack.c.l.b16 %v1415
      %v1584 = vunpack.c.h.b16 %v1415
      %v1585 = vunpack.c.l.b16 %v1416
      %v1586 = vunpack.c.h.b16 %v1416
      %v1587 = vunpack.c.l.b16 %v1417
      %v1588 = vunpack.c.h.b16 %v1417
      %v1589 = vunpack.c.l.b16 %v1418
      %v1590 = vunpack.c.l.b16 %v1419
      %v1591 = vunpack.c.h.b16 %v1419
      %v1592 = vunpack.c.l.b16 %v1420
      %v1593 = vunpack.c.h.b16 %v1420
      %v1594 = vunpack.c.l.b16 %v1421
      %v1595 = vunpack.c.h.b16 %v1421
      %v1596 = vunpack.c.l.b16 %v1422
      %v1597 = vunpack.c.l.b16 %v1423
      %v1598 = vunpack.c.h.b16 %v1423
      %v1599 = vunpack.c.l.b16 %v1424
      %v1600 = vunpack.c.h.b16 %v1424
      %v1601 = vunpack.c.l.b16 %v1425
      %v1602 = vunpack.c.h.b16 %v1425
      %v1603 = vunpack.c.l.b16 %v1426
      %v1604 = vunpack.c.l.b16 %v1427
      %v1605 = vunpack.c.h.b16 %v1427
      %v1606 = vunpack.c.l.b16 %v1428
      %v1607 = vunpack.c.h.b16 %v1428
      %v1608 = vunpack.c.l.b16 %v1429
      %v1609 = vunpack.c.h.b16 %v1429
      %v1610 = vunpack.c.l.b16 %v1430
      %v1611 = vunpack.c.l.b16 %v1431
      %v1612 = vunpack.c.h.b16 %v1431
      %v1613 = vunpack.c.l.b16 %v1432
      %v1614 = vunpack.c.h.b16 %v1432
      %v1615 = vunpack.c.l.b16 %v1433
      %v1616 = vunpack.c.h.b16 %v1433
      %v1617 = vunpack.c.l.b16 %v1434
      %v1618 = vunpack.c.l.b16 %v1435
      %v1619 = vunpack.c.h.b16 %v1435
      %v1620 = vunpack.c.l.b16 %v1436
      %v1621 = vunpack.c.h.b16 %v1436
      %v1622 = vunpack.c.l.b16 %v1437
      %v1623 = vunpack.c.h.b16 %v1437
      %v1624 = vunpack.c.l.b16 %v1438
      %v1625 = vunpack.c.l.b16 %v1439
      %v1626 = vunpack.c.h.b16 %v1439
      %v1627 = vunpack.c.l.b16 %v1440
      %v1628 = vunpack.c.h.b16 %v1440
      %v1629 = vunpack.c.l.b16 %v1441
      %v1630 = vunpack.c.h.b16 %v1441
      %v1631 = vunpack.c.l.b16 %v1442
      %v1632 = vunpack.c.l.b16 %v1443
      %v1633 = vunpack.c.h.b16 %v1443
      %v1634 = vunpack.c.l.b16 %v1444
      %v1635 = vunpack.c.h.b16 %v1444
      %v1636 = vunpack.c.l.b16 %v1445
      %v1637 = vunpack.c.h.b16 %v1445
      %v1638 = vunpack.c.l.b16 %v1446
      %v1639 = vpack.c.b16 %v1534, %v1527
      %v1640 = vpack.c.b16 %v1535, %v1528
      %v1641 = vpack.c.b16 %v1536, %v1529
      %v1642 = vpack.c.b16 %v1537, %v1530
      %v1643 = vpack.c.b16 %v1538, %v1531
      %v1644 = vpack.c.b16 %v1539, %v1532
      %v1645 = vpack.c.b16 %v1540, %v1533
      %v1646 = vpack.c.b16 %v1548, %v1541
      %v1647 = vpack.c.b16 %v1549, %v1542
      %v1648 = vpack.c.b16 %v1550, %v1543
      %v1649 = vpack.c.b16 %v1551, %v1544
      %v1650 = vpack.c.b16 %v1552, %v1545
      %v1651 = vpack.c.b16 %v1553, %v1546
      %v1652 = vpack.c.b16 %v1554, %v1547
      %v1653 = vpack.c.b16 %v1562, %v1555
      %v1654 = vpack.c.b16 %v1563, %v1556
      %v1655 = vpack.c.b16 %v1564, %v1557
      %v1656 = vpack.c.b16 %v1565, %v1558
      %v1657 = vpack.c.b16 %v1566, %v1559
      %v1658 = vpack.c.b16 %v1567, %v1560
      %v1659 = vpack.c.b16 %v1568, %v1561
      %v1660 = vpack.c.b16 %v1576, %v1569
      %v1661 = vpack.c.b16 %v1577, %v1570
      %v1662 = vpack.c.b16 %v1578, %v1571
      %v1663 = vpack.c.b16 %v1579, %v1572
      %v1664 = vpack.c.b16 %v1580, %v1573
      %v1665 = vpack.c.b16 %v1581, %v1574
      %v1666 = vpack.c.b16 %v1582, %v1575
      %v1667 = vpack.c.b16 %v1590, %v1583
      %v1668 = vpack.c.b16 %v1591, %v1584
      %v1669 = vpack.c.b16 %v1592, %v1585
      %v1670 = vpack.c.b16 %v1593, %v1586
      %v1671 = vpack.c.b16 %v1594, %v1587
      %v1672 = vpack.c.b16 %v1595, %v1588
      %v1673 = vpack.c.b16 %v1596, %v1589
      %v1674 = vpack.c.b16 %v1604, %v1597
      %v1675 = vpack.c.b16 %v1605, %v1598
      %v1676 = vpack.c.b16 %v1606, %v1599
      %v1677 = vpack.c.b16 %v1607, %v1600
      %v1678 = vpack.c.b16 %v1608, %v1601
      %v1679 = vpack.c.b16 %v1609, %v1602
      %v1680 = vpack.c.b16 %v1610, %v1603
      %v1681 = vpack.c.b16 %v1618, %v1611
      %v1682 = vpack.c.b16 %v1619, %v1612
      %v1683 = vpack.c.b16 %v1620, %v1613
      %v1684 = vpack.c.b16 %v1621, %v1614
      %v1685 = vpack.c.b16 %v1622, %v1615
      %v1686 = vpack.c.b16 %v1623, %v1616
      %v1687 = vpack.c.b16 %v1624, %v1617
      %v1688 = vpack.c.b16 %v1632, %v1625
      %v1689 = vpack.c.b16 %v1633, %v1626
      %v1690 = vpack.c.b16 %v1634, %v1627
      %v1691 = vpack.c.b16 %v1635, %v1628
      %v1692 = vpack.c.b16 %v1636, %v1629
      %v1693 = vpack.c.b16 %v1637, %v1630
      %v1694 = vpack.c.b16 %v1638, %v1631
      %1751 = vmatpush.bf16.msra.mxu0 %v1688
      %1752 = vmatpush.bf16.msra.mxu0 %v1681
      %1753 = vmatpush.bf16.msra.mxu0 %v1674
      %1754 = vmatpush.bf16.msra.mxu0 %v1667
      %1755 = vmatpush.bf16.msra.mxu0 %v1660
      %1756 = vmatpush.bf16.msra.mxu0 %v1653
      %1757 = vmatpush.bf16.msra.mxu0 %v1646
      %1758 = vmatpush.bf16.msra.mxu0 %v1639
      %1759 = vmatmul.bf16.gmra.mxu0 %v1381
      %v1760 = vpop.f32.mrf.mxu0
      %v1761 = vadd.f32 %v1449, %v1760
      %v1762 = vpop.f32.mrf.mxu0
      %v1763 = vadd.f32 %v1449, %v1762
      %1764 = vmatmul.bf16.gmra.mxu0 %v1382
      %v1765 = vpop.f32.mrf.mxu0
      %v1766 = vadd.f32 %v1449, %v1765
      %v1767 = vpop.f32.mrf.mxu0
      %1768 = vdwg.mxu0
      %1769 = vmatpush.bf16.msra.mxu0 %v1689
      %1770 = vmatpush.bf16.msra.mxu0 %v1682
      %1771 = vmatpush.bf16.msra.mxu0 %v1675
      %1772 = vmatpush.bf16.msra.mxu0 %v1668
      %1773 = vmatpush.bf16.msra.mxu0 %v1661
      %1774 = vmatpush.bf16.msra.mxu0 %v1654
      %1775 = vmatpush.bf16.msra.mxu0 %v1647
      %1776 = vmatpush.bf16.msra.mxu0 %v1640
      %1777 = vmatmul.bf16.gmra.mxu0 %v1381
      %v1778 = vpop.f32.mrf.mxu0
      %v1779 = vadd.f32 %v1450, %v1778
      %v1780 = vpop.f32.mrf.mxu0
      %v1781 = vadd.f32 %v1450, %v1780
      %1782 = vmatmul.bf16.gmra.mxu0 %v1382
      %v1783 = vpop.f32.mrf.mxu0
      %v1784 = vadd.f32 %v1450, %v1783
      %v1785 = vpop.f32.mrf.mxu0
      %1786 = vdwg.mxu0
      %1787 = vmatpush.bf16.msra.mxu0 %v1690
      %1788 = vmatpush.bf16.msra.mxu0 %v1683
      %1789 = vmatpush.bf16.msra.mxu0 %v1676
      %1790 = vmatpush.bf16.msra.mxu0 %v1669
      %1791 = vmatpush.bf16.msra.mxu0 %v1662
      %1792 = vmatpush.bf16.msra.mxu0 %v1655
      %1793 = vmatpush.bf16.msra.mxu0 %v1648
      %1794 = vmatpush.bf16.msra.mxu0 %v1641
      %1795 = vmatmul.bf16.gmra.mxu0 %v1381
      %v1796 = vpop.f32.mrf.mxu0
      %v1797 = vadd.f32 %v1451, %v1796
      %v1798 = vpop.f32.mrf.mxu0
      %v1799 = vadd.f32 %v1451, %v1798
      %1800 = vmatmul.bf16.gmra.mxu0 %v1382
      %v1801 = vpop.f32.mrf.mxu0
      %v1802 = vadd.f32 %v1451, %v1801
      %v1803 = vpop.f32.mrf.mxu0
      %1804 = vdwg.mxu0
      %1805 = vmatpush.bf16.msra.mxu0 %v1691
      %1806 = vmatpush.bf16.msra.mxu0 %v1684
      %1807 = vmatpush.bf16.msra.mxu0 %v1677
      %1808 = vmatpush.bf16.msra.mxu0 %v1670
      %1809 = vmatpush.bf16.msra.mxu0 %v1663
      %1810 = vmatpush.bf16.msra.mxu0 %v1656
      %1811 = vmatpush.bf16.msra.mxu0 %v1649
      %1812 = vmatpush.bf16.msra.mxu0 %v1642
      %1813 = vmatmul.bf16.gmra.mxu0 %v1381
      %v1814 = vpop.f32.mrf.mxu0
      %v1815 = vadd.f32 %v1452, %v1814
      %v1816 = vpop.f32.mrf.mxu0
      %v1817 = vadd.f32 %v1452, %v1816
      %1818 = vmatmul.bf16.gmra.mxu0 %v1382
      %v1819 = vpop.f32.mrf.mxu0
      %v1820 = vadd.f32 %v1452, %v1819
      %v1821 = vpop.f32.mrf.mxu0
      %1822 = vdwg.mxu0
      %1823 = vmatpush.bf16.msra.mxu0 %v1692
      %1824 = vmatpush.bf16.msra.mxu0 %v1685
      %1825 = vmatpush.bf16.msra.mxu0 %v1678
      %1826 = vmatpush.bf16.msra.mxu0 %v1671
      %1827 = vmatpush.bf16.msra.mxu0 %v1664
      %1828 = vmatpush.bf16.msra.mxu0 %v1657
      %1829 = vmatpush.bf16.msra.mxu0 %v1650
      %1830 = vmatpush.bf16.msra.mxu0 %v1643
      %1831 = vmatmul.bf16.gmra.mxu0 %v1381
      %v1832 = vpop.f32.mrf.mxu0
      %v1833 = vadd.f32 %v1453, %v1832
      %v1834 = vpop.f32.mrf.mxu0
      %v1835 = vadd.f32 %v1453, %v1834
      %1836 = vmatmul.bf16.gmra.mxu0 %v1382
      %v1837 = vpop.f32.mrf.mxu0
      %v1838 = vadd.f32 %v1453, %v1837
      %v1839 = vpop.f32.mrf.mxu0
      %1840 = vdwg.mxu0
      %1841 = vmatpush.bf16.msra.mxu0 %v1693
      %1842 = vmatpush.bf16.msra.mxu0 %v1686
      %1843 = vmatpush.bf16.msra.mxu0 %v1679
      %1844 = vmatpush.bf16.msra.mxu0 %v1672
      %1845 = vmatpush.bf16.msra.mxu0 %v1665
      %1846 = vmatpush.bf16.msra.mxu0 %v1658
      %1847 = vmatpush.bf16.msra.mxu0 %v1651
      %1848 = vmatpush.bf16.msra.mxu0 %v1644
      %1849 = vmatmul.bf16.gmra.mxu0 %v1381
      %v1850 = vpop.f32.mrf.mxu0
      %v1851 = vadd.f32 %v1454, %v1850
      %v1852 = vpop.f32.mrf.mxu0
      %v1853 = vadd.f32 %v1454, %v1852
      %1854 = vmatmul.bf16.gmra.mxu0 %v1382
      %v1855 = vpop.f32.mrf.mxu0
      %v1856 = vadd.f32 %v1454, %v1855
      %v1857 = vpop.f32.mrf.mxu0
      %1858 = vdwg.mxu0
      %1859 = vmatpush.bf16.msra.mxu0 %v1694
      %1860 = vmatpush.bf16.msra.mxu0 %v1687
      %1861 = vmatpush.bf16.msra.mxu0 %v1680
      %1862 = vmatpush.bf16.msra.mxu0 %v1673
      %1863 = vmatpush.bf16.msra.mxu0 %v1666
      %1864 = vmatpush.bf16.msra.mxu0 %v1659
      %1865 = vmatpush.bf16.msra.mxu0 %v1652
      %1866 = vmatpush.bf16.msra.mxu0 %v1645
      %1867 = vmatmul.bf16.gmra.mxu0 %v1381
      %v1868 = vpop.f32.mrf.mxu0
      %v1869 = vadd.f32 %v1455, %v1868
      %v1870 = vpop.f32.mrf.mxu0
      %v1871 = vadd.f32 %v1455, %v1870
      %1872 = vmatmul.bf16.gmra.mxu0 %v1382
      %v1873 = vpop.f32.mrf.mxu0
      %v1874 = vadd.f32 %v1455, %v1873
      %v1875 = vpop.f32.mrf.mxu0
      %1876 = vdwg.mxu0
      %v1877 = vtanh.pop %v1761
      %v1878 = vtanh.pop %v1779
      %v1879 = vtanh.pop %v1797
      %v1880 = vtanh.pop %v1815
      %v1881 = vtanh.pop %v1833
      %v1882 = vtanh.pop %v1851
      %v1883 = vtanh.pop %v1869
      %v1884 = vtanh.pop %v1763
      %v1885 = vtanh.pop %v1781
      %v1886 = vtanh.pop %v1799
      %v1887 = vtanh.pop %v1817
      %v1888 = vtanh.pop %v1835
      %v1889 = vtanh.pop %v1853
      %v1890 = vtanh.pop %v1871
      %v1891 = vtanh.pop %v1766
      %v1892 = vtanh.pop %v1784
      %v1893 = vtanh.pop %v1802
      %v1894 = vtanh.pop %v1820
      %v1895 = vtanh.pop %v1838
      %v1896 = vtanh.pop %v1856
      %v1897 = vtanh.pop %v1874
      %1898 = vst [vmem:[%s501] sm:$0xff] %v1877
      %1899 = vst [vmem:[%s501 + $0x8] sm:$0xff] %v1878
      %1900 = vst [vmem:[%s501 + $0x10] sm:$0xff] %v1879
      %1901 = vst [vmem:[%s501 + $0x18] sm:$0xff] %v1880
      %1902 = vst [vmem:[%s501 + $0x20] sm:$0xff] %v1881
      %1903 = vst [vmem:[%s501 + $0x28] sm:$0xff] %v1882
      %1904 = vst.msk [vmem:[%s501 + $0x30] sm:$0xff] %vm935, %v1883
      %1905 = vst [vmem:[%s501 + $0x38] sm:$0xff] %v1884
      %1906 = vst [vmem:[%s501 + $0x40] sm:$0xff] %v1885
      %1907 = vst [vmem:[%s501 + $0x48] sm:$0xff] %v1886
      %1908 = vst [vmem:[%s501 + $0x50] sm:$0xff] %v1887
      %1909 = vst [vmem:[%s501 + $0x58] sm:$0xff] %v1888
      %1910 = vst [vmem:[%s501 + $0x60] sm:$0xff] %v1889
      %1911 = vst.msk [vmem:[%s501 + $0x68] sm:$0xff] %vm935, %v1890
      %1912 = vst [vmem:[%s501 + $0x70] sm:$0xff] %v1891
      %1913 = vst [vmem:[%s501 + $0x78] sm:$0xff] %v1892
      %1914 = vst [vmem:[%s501 + $0x80] sm:$0xff] %v1893
      %1915 = vst [vmem:[%s501 + $0x88] sm:$0xff] %v1894
      %1916 = vst [vmem:[%s501 + $0x90] sm:$0xff] %v1895
      %1917 = vst [vmem:[%s501 + $0x98] sm:$0xff] %v1896
      %1918 = vst.msk [vmem:[%s501 + $0xa0] sm:$0xff] %vm935, %v1897
      %s1919 = smul.u32 3, %s26
      %p1920 = scmp.lt.s32.totalorder %s1919, 5
      %s1921 = scalar_select %p1920, %s1919, 5
      %s1922 = smul.addr %s1921, 7
      %s1923 = smul.addr %s1922, 8
      %s1924 = scalar_lea.vmem %s15, %s1923
      // Predicated region
      $region81: #{autoencoder_forward.1} parent=79 // pred_check
        %p1925 = pneg %p364
      $region82: #{autoencoder_forward.1} parent=79 // pred_check_branch
        %1927 = sbr.rel (%p1925) target = $region84
      $region83: #{autoencoder_forward.1} parent=79 // pred_region
        %s1928 = smul.u32 3, %s26
      $region84: #{autoencoder_forward.1} parent=79 // pred_fallthru
        _
    $region80: #{autoencoder_forward.1} parent=5 // pred_fallthru
      _
    %p1929 = scmp.le.s32.totalorder 2, %s21
    // Predicated region
    $region85: #{autoencoder_forward.1} parent=5 // pred_check
      %p1930 = pneg %p1929
    $region86: #{autoencoder_forward.1} parent=5 // pred_check_branch
      %1932 = sbr.rel (%p1930) target = $region88
    $region87: #{autoencoder_forward.1} parent=5 // pred_region
      %s1933 = ssub.s32 %s21, 2
      // Predicated region
      $region89: #{autoencoder_forward.1} parent=87 // pred_check
        %p1934 = pneg %p370
      $region90: #{autoencoder_forward.1} parent=87 // pred_check_branch
        %1936 = sbr.rel (%p1934) target = $region92
      $region91: #{autoencoder_forward.1} parent=87 // pred_region
        %s1937 = smul.u32 3, %s27
        %p1938 = scmp.lt.s32.totalorder %s1937, 5
        %s1939 = scalar_select %p1938, %s1937, 5
        %s1940 = smul.addr %s1939, 7
        %s1941 = smul.addr %s1940, 8
        %s1942 = scalar_lea.vmem %s15, %s1941
      $region92: #{autoencoder_forward.1} parent=87 // pred_fallthru
        _
    $region88: #{autoencoder_forward.1} parent=5 // pred_fallthru
      _
  $region6: #{autoencoder_forward.1} parent=0 // loop_footer
    %s25 = sadd.s32 1, %s21
  $region7: #{autoencoder_forward.1} parent=0 // loop_footer_branch
    %20 = sbr.rel target = $region3
  $region8: #{autoencoder_forward.1} parent=0 // loop_exit
    _

</llo_original>
